<compile_context>
chip_gen: v7x
topology: tpu7x:2x2x1
jax: 0.10.0
libtpu: 0.0.40
codegen_flags: <defaults>
</compile_context>

<pallas_src>
import functools

import jax
import jax.numpy as jnp
from jax.experimental import pallas as pl
from jax.experimental.pallas import tpu as pltpu


# ============================================================================
# in-kernel helpers
# ============================================================================

def _layer_norm(x, g, b, eps=1e-5):
    mu = jnp.mean(x, axis=-1, keepdims=True)
    var = jnp.mean(jnp.square(x - mu), axis=-1, keepdims=True)
    return (x - mu) * jax.lax.rsqrt(var + eps) * g + b


def _sigmoid(x):
    return 1.0 / (1.0 + jnp.exp(-x))


# ============================================================================
# Pallas kernels
# ============================================================================

def _embedding_kernel(wins_ref, wd_ref, cw_ref, cb_ref, pc_ref, pw_ref,
                      l1w_ref, l1b_ref, g1w_ref, g1b_ref,
                      l2w_ref, l2b_ref, g2w_ref, g2b_ref,
                      o_ref, *, out_w):
    """char conv(1,5)+relu+max  ->  proj(concat(ch, word))  ->  2x highway."""
    cb = cb_ref[...]
    ch = None
    for j in range(out_w):
        h = jnp.dot(wins_ref[j], cw_ref[...],
                    preferred_element_type=jnp.float32) + cb
        h = jnp.maximum(h, 0.0)
        ch = h if ch is None else jnp.maximum(ch, h)
    # proj of concat([ch, wd]) done as split matmuls (avoids lane-concat)
    emb = (jnp.dot(ch.astype(jnp.bfloat16), pc_ref[...],
                   preferred_element_type=jnp.float32)
           + jnp.dot(wd_ref[...], pw_ref[...],
                     preferred_element_type=jnp.float32))
    for lw, lb, gw, gb in ((l1w_ref, l1b_ref, g1w_ref, g1b_ref),
                           (l2w_ref, l2b_ref, g2w_ref, g2b_ref)):
        e16 = emb.astype(jnp.bfloat16)
        gate = _sigmoid(jnp.dot(e16, gw[...],
                                preferred_element_type=jnp.float32) + gb[...])
        lin = jnp.maximum(jnp.dot(e16, lw[...],
                                  preferred_element_type=jnp.float32) + lb[...],
                          0.0)
        emb = gate * lin + (1.0 - gate) * emb
    o_ref[...] = emb.astype(o_ref.dtype)


def _conv_block_kernel(x_ref, g_ref, b_ref, dw_ref, pw_ref, pb_ref, o_ref, *, k):
    """LN -> depthwise conv1d ('same') -> pointwise conv + ReLU -> residual."""
    x = x_ref[0].astype(jnp.float32)                      # (L, D)
    L = x.shape[0]
    xn = _layer_norm(x, g_ref[...], b_ref[...])
    pad = k // 2
    zeros = jnp.zeros((pad, x.shape[1]), jnp.float32)
    xp = jnp.concatenate([zeros, xn, zeros], axis=0)      # (L + 2*pad, D)
    dw = dw_ref[...].astype(jnp.float32)                  # (k, D)
    conv = dw[0:1] * xp[0:L]
    for j in range(1, k):
        conv = conv + dw[j:j + 1] * xp[j:j + L]
    y = jnp.dot(conv.astype(jnp.bfloat16), pw_ref[...],
                preferred_element_type=jnp.float32) + pb_ref[...]
    y = jnp.maximum(y, 0.0)
    o_ref[0] = (x + y).astype(o_ref.dtype)


def _attn_qkv_kernel(x_ref, g_ref, b_ref, qw_ref, kw_ref, vw_ref, rw_ref,
                     pos_ref, rwb_ref, rrb_ref,
                     q_out, k_out, v_out, bd_out, *, H):
    """LN -> per-head q/k/v, r projections, unshifted BD rel scores."""
    x = x_ref[0].astype(jnp.float32)                      # (L, D)
    xn = _layer_norm(x, g_ref[...], b_ref[...]).astype(jnp.bfloat16)
    pos = pos_ref[...]                                    # (klen, D) bf16
    for h in range(H):
        q = jnp.dot(xn, qw_ref[h], preferred_element_type=jnp.float32)
        k = jnp.dot(xn, kw_ref[h], preferred_element_type=jnp.float32)
        v = jnp.dot(xn, vw_ref[h], preferred_element_type=jnp.float32)
        r = jnp.dot(pos, rw_ref[h], preferred_element_type=jnp.float32)
        q_out[0, h] = (q + rwb_ref[h]).astype(q_out.dtype)
        k_out[0, h] = k.astype(k_out.dtype)
        v_out[0, h] = v.astype(v_out.dtype)
        rr_q = (q + rrb_ref[h]).astype(jnp.bfloat16)
        bd = jax.lax.dot_general(rr_q, r.astype(jnp.bfloat16),
                                 (((1,), (1,)), ((), ())),
                                 preferred_element_type=jnp.float32)
        bd_out[0, h] = bd


def _attn_core_kernel(xres_ref, q_ref, k_ref, v_ref, bd_ref, mask_ref, ow_ref,
                      o_ref, *, H, scale):
    """AC scores + BD + in-kernel mask + softmax + PV + O-proj + residual."""
    L = q_ref.shape[2]
    klen = bd_ref.shape[3]
    row = jax.lax.broadcasted_iota(jnp.int32, (L, klen), 0)
    col = jax.lax.broadcasted_iota(jnp.int32, (L, klen), 1)
    keypad = mask_ref[0]                                  # (1, klen)
    valid = jnp.logical_and(col <= row, keypad > 0.0)     # causal + key pad
    acc = xres_ref[0].astype(jnp.float32)                 # residual (L, D)
    for h in range(H):
        s = jax.lax.dot_general(q_ref[0, h], k_ref[0, h],
                                (((1,), (1,)), ((), ())),
                                preferred_element_type=jnp.float32)
        s = (s + bd_ref[0, h]) * scale
        s = jnp.where(valid, s, -1e30)
        m = jnp.max(s, axis=-1, keepdims=True)
        e = jnp.exp(s - m)
        p = e * pl.reciprocal(jnp.sum(e, axis=-1, keepdims=True), approx=True)
        ctx = jnp.dot(p.astype(jnp.bfloat16), v_ref[0, h],
                      preferred_element_type=jnp.float32)
        acc = acc + jnp.dot(ctx.astype(jnp.bfloat16), ow_ref[h],
                            preferred_element_type=jnp.float32)
    o_ref[0] = acc.astype(o_ref.dtype)


def _ffn_block_kernel(x_ref, g_ref, b_ref, w1_ref, b1_ref, w2_ref, b2_ref, o_ref):
    """LN -> FFN1 + ReLU -> FFN2 -> residual."""
    x = x_ref[0].astype(jnp.float32)
    xn = _layer_norm(x, g_ref[...], b_ref[...]).astype(jnp.bfloat16)
    h = jnp.dot(xn, w1_ref[...], preferred_element_type=jnp.float32) + b1_ref[...]
    h = jnp.maximum(h, 0.0).astype(jnp.bfloat16)
    y = jnp.dot(h, w2_ref[...], preferred_element_type=jnp.float32) + b2_ref[...]
    o_ref[0] = (x + y).astype(o_ref.dtype)


def _cq_attention_kernel(c_ref, q_ref, cm_ref, qm_ref, wc_ref, wq_ref, wm_ref,
                         bias_ref, wr_ref, o_ref):
    """Trilinear similarity + bidirectional attention + fused cq_resizer."""
    C = c_ref[0].astype(jnp.float32)                      # (Lc, D)
    Qb = q_ref[0]                                         # (Lq, D) bf16
    Qf = Qb.astype(jnp.float32)
    s0 = jnp.sum(C * wc_ref[...], axis=-1, keepdims=True)                 # (Lc,1)
    s1 = jax.lax.dot_general(wq_ref[...], Qf, (((1,), (1,)), ((), ())))   # (1,Lq)
    s2 = jax.lax.dot_general((C * wm_ref[...]).astype(jnp.bfloat16), Qb,
                             (((1,), (1,)), ((), ())),
                             preferred_element_type=jnp.float32)          # (Lc,Lq)
    S = s2 + s0 + s1 + bias_ref[...]
    qmask = qm_ref[0] > 0.0                               # (1, Lq)
    cmask = cm_ref[0] > 0.0                               # (Lc, 1)
    # softmax over query positions (rows)
    Sq = jnp.where(qmask, S, -1e30)
    m1 = jnp.max(Sq, axis=-1, keepdims=True)
    e1 = jnp.exp(Sq - m1)
    S1 = e1 * pl.reciprocal(jnp.sum(e1, axis=-1, keepdims=True), approx=True)
    # softmax over context positions (columns)
    Sc = jnp.where(cmask, S, -1e30)
    m2 = jnp.max(Sc, axis=0, keepdims=True)
    e2 = jnp.exp(Sc - m2)
    S2 = e2 * pl.reciprocal(jnp.sum(e2, axis=0, keepdims=True), approx=True)
    S1b = S1.astype(jnp.bfloat16)
    A = jnp.dot(S1b, Qb, preferred_element_type=jnp.float32)              # (Lc,D)
    S2t = jnp.transpose(S2).astype(jnp.bfloat16)                          # (Lq,Lc)
    T = jnp.dot(S2t, c_ref[0], preferred_element_type=jnp.float32)        # (Lq,D)
    Bm = jnp.dot(S1b, T.astype(jnp.bfloat16),
                 preferred_element_type=jnp.float32)                      # (Lc,D)
    # fused cq_resizer of concat([C, A, C*A, C*B]) as split matmuls
    out = (jnp.dot(c_ref[0], wr_ref[0], preferred_element_type=jnp.float32)
           + jnp.dot(A.astype(jnp.bfloat16), wr_ref[1],
                     preferred_element_type=jnp.float32)
           + jnp.dot((C * A).astype(jnp.bfloat16), wr_ref[2],
                     preferred_element_type=jnp.float32)
           + jnp.dot((C * Bm).astype(jnp.bfloat16), wr_ref[3],
                     preferred_element_type=jnp.float32))
    o_ref[0] = out.astype(o_ref.dtype)


def _qa_output_kernel(m1_ref, m2_ref, m3_ref, mask_ref, w1_ref, w2_ref,
                      p1_ref, p2_ref):
    """Start/end pointer logits + masked log-softmax (fully fused)."""
    M1 = m1_ref[0].astype(jnp.float32)
    M2 = m2_ref[0].astype(jnp.float32)
    M3 = m3_ref[0].astype(jnp.float32)
    valid = mask_ref[0] > 0.0                             # (1, Lc)
    dn = (((1,), (1,)), ((), ()))
    y1 = (jax.lax.dot_general(w1_ref[0], M1, dn)
          + jax.lax.dot_general(w1_ref[1], M2, dn))       # (1, Lc)
    y2 = (jax.lax.dot_general(w2_ref[0], M1, dn)
          + jax.lax.dot_general(w2_ref[1], M3, dn))

    def log_softmax(y):
        z = jnp.where(valid, y, -1e30)
        m = jnp.max(z, axis=-1, keepdims=True)
        z = z - m
        return z - jnp.log(jnp.sum(jnp.exp(z), axis=-1, keepdims=True))

    p1_ref[0] = log_softmax(y1)
    p2_ref[0] = log_softmax(y2)


# ============================================================================
# pallas_call wrappers
# ============================================================================

def _conv_block(x, ln_g, ln_b, dw_w, pw_w, pw_b):
    B, L, D = x.shape
    k = dw_w.shape[0]
    kern = functools.partial(_conv_block_kernel, k=k)
    return pl.pallas_call(
        kern,
        grid=(B,),
        in_specs=[
            pl.BlockSpec((1, L, D), lambda i: (i, 0, 0)),
            pl.BlockSpec((1, D), lambda i: (0, 0)),
            pl.BlockSpec((1, D), lambda i: (0, 0)),
            pl.BlockSpec((k, D), lambda i: (0, 0)),
            pl.BlockSpec((D, D), lambda i: (0, 0)),
            pl.BlockSpec((1, D), lambda i: (0, 0)),
        ],
        out_specs=pl.BlockSpec((1, L, D), lambda i: (i, 0, 0)),
        out_shape=jax.ShapeDtypeStruct((B, L, D), x.dtype),
        compiler_params=pltpu.CompilerParams(dimension_semantics=("parallel",)),
    )(x, ln_g, ln_b, dw_w, pw_w, pw_b)


def _attn_qkv(x, ap, ln_g, ln_b, pos, r_w_bias, r_r_bias):
    B, L, D = x.shape
    H, _, dh = ap['q_w'].shape
    klen = pos.shape[0]
    kern = functools.partial(_attn_qkv_kernel, H=H)
    out_shape = (
        jax.ShapeDtypeStruct((B, H, L, dh), jnp.bfloat16),
        jax.ShapeDtypeStruct((B, H, L, dh), jnp.bfloat16),
        jax.ShapeDtypeStruct((B, H, L, dh), jnp.bfloat16),
        jax.ShapeDtypeStruct((B, H, L, klen), jnp.float32),
    )
    return pl.pallas_call(
        kern,
        grid=(B,),
        in_specs=[
            pl.BlockSpec((1, L, D), lambda i: (i, 0, 0)),
            pl.BlockSpec((1, D), lambda i: (0, 0)),
            pl.BlockSpec((1, D), lambda i: (0, 0)),
            pl.BlockSpec((H, D, dh), lambda i: (0, 0, 0)),
            pl.BlockSpec((H, D, dh), lambda i: (0, 0, 0)),
            pl.BlockSpec((H, D, dh), lambda i: (0, 0, 0)),
            pl.BlockSpec((H, D, dh), lambda i: (0, 0, 0)),
            pl.BlockSpec((klen, D), lambda i: (0, 0)),
            pl.BlockSpec((H, 1, dh), lambda i: (0, 0, 0)),
            pl.BlockSpec((H, 1, dh), lambda i: (0, 0, 0)),
        ],
        out_specs=(
            pl.BlockSpec((1, H, L, dh), lambda i: (i, 0, 0, 0)),
            pl.BlockSpec((1, H, L, dh), lambda i: (i, 0, 0, 0)),
            pl.BlockSpec((1, H, L, dh), lambda i: (i, 0, 0, 0)),
            pl.BlockSpec((1, H, L, klen), lambda i: (i, 0, 0, 0)),
        ),
        out_shape=out_shape,
        compiler_params=pltpu.CompilerParams(dimension_semantics=("parallel",)),
    )(x, ln_g, ln_b, ap['q_w'], ap['k_w'], ap['v_w'], ap['r_w'],
      pos, r_w_bias, r_r_bias)


def _attn_core(x, q, k, v, bd, keypad3, o_w, scale):
    B, L, D = x.shape
    H, dh = q.shape[1], q.shape[3]
    klen = bd.shape[3]
    kern = functools.partial(_attn_core_kernel, H=H, scale=scale)
    return pl.pallas_call(
        kern,
        grid=(B,),
        in_specs=[
            pl.BlockSpec((1, L, D), lambda i: (i, 0, 0)),
            pl.BlockSpec((1, H, L, dh), lambda i: (i, 0, 0, 0)),
            pl.BlockSpec((1, H, L, dh), lambda i: (i, 0, 0, 0)),
            pl.BlockSpec((1, H, L, dh), lambda i: (i, 0, 0, 0)),
            pl.BlockSpec((1, H, L, klen), lambda i: (i, 0, 0, 0)),
            pl.BlockSpec((1, 1, klen), lambda i: (i, 0, 0)),
            pl.BlockSpec((H, dh, D), lambda i: (0, 0, 0)),
        ],
        out_specs=pl.BlockSpec((1, L, D), lambda i: (i, 0, 0)),
        out_shape=jax.ShapeDtypeStruct((B, L, D), x.dtype),
        compiler_params=pltpu.CompilerParams(dimension_semantics=("parallel",)),
    )(x, q, k, v, bd, keypad3, o_w)


def _ffn_block(x, ln_g, ln_b, w1, b1, w2, b2):
    B, L, D = x.shape
    Di = w1.shape[1]
    return pl.pallas_call(
        _ffn_block_kernel,
        grid=(B,),
        in_specs=[
            pl.BlockSpec((1, L, D), lambda i: (i, 0, 0)),
            pl.BlockSpec((1, D), lambda i: (0, 0)),
            pl.BlockSpec((1, D), lambda i: (0, 0)),
            pl.BlockSpec((D, Di), lambda i: (0, 0)),
            pl.BlockSpec((1, Di), lambda i: (0, 0)),
            pl.BlockSpec((Di, D), lambda i: (0, 0)),
            pl.BlockSpec((1, D), lambda i: (0, 0)),
        ],
        out_specs=pl.BlockSpec((1, L, D), lambda i: (i, 0, 0)),
        out_shape=jax.ShapeDtypeStruct((B, L, D), x.dtype),
        compiler_params=pltpu.CompilerParams(dimension_semantics=("parallel",)),
    )(x, ln_g, ln_b, w1, b1, w2, b2)


# ============================================================================
# model glue (XLA only: gathers, rel_shift skew, orchestration)
# ============================================================================

def positional_embedding(klen, d_model):
    pos_seq = jnp.arange(klen - 1, -1, -1.0, dtype=jnp.float32)
    inv_freq = 1.0 / (10000.0 ** (jnp.arange(0, d_model, 2, dtype=jnp.float32)
                                  / d_model))
    sinusoid = jnp.outer(pos_seq, inv_freq)
    return jnp.concatenate([jnp.sin(sinusoid), jnp.cos(sinusoid)], axis=-1)


def rel_shift(x):
    """Transformer-XL relative shift on (B,H,q,k)."""
    B, H, q, k = x.shape
    x = jnp.pad(x, ((0, 0), (0, 0), (0, 0), (1, 0)))
    x = x.reshape(B, H, k + 1, q)
    x = x[:, :, 1:, :]
    return x.reshape(B, H, q, k)


@jax.jit
def embedding_fwd(p, word_table, char_table, word_ids, char_ids):
    """layers.Embedding fully fused in one kernel (gathers stay in XLA)."""
    char_vecs = char_table[char_ids]               # (B, L, W, cemb)
    word_vecs = word_table[word_ids]               # (B, L, wemb)
    B, L, W, cemb = char_vecs.shape
    wemb = word_vecs.shape[-1]
    kw = 5
    out_w = W - kw + 1
    R = B * L
    K = kw * cemb
    d = p['char_w'].shape[1]
    wins = jnp.stack(
        [char_vecs[:, :, j:j + kw, :].reshape(R, K) for j in range(out_w)],
        axis=0).astype(jnp.bfloat16)               # (out_w, R, K)
    wd = word_vecs.reshape(R, wemb).astype(jnp.bfloat16)
    tile = 8 if R % 8 == 0 else R
    kern = functools.partial(_embedding_kernel, out_w=out_w)
    hw1, hw2 = p['highway']
    emb = pl.pallas_call(
        kern,
        grid=(R // tile,),
        in_specs=[
            pl.BlockSpec((out_w, tile, K), lambda i: (0, i, 0)),
            pl.BlockSpec((tile, wemb), lambda i: (i, 0)),
            pl.BlockSpec((K, d), lambda i: (0, 0)),
            pl.BlockSpec((1, d), lambda i: (0, 0)),
            pl.BlockSpec((d, d), lambda i: (0, 0)),
            pl.BlockSpec((wemb, d), lambda i: (0, 0)),
            pl.BlockSpec((d, d), lambda i: (0, 0)),
            pl.BlockSpec((1, d), lambda i: (0, 0)),
            pl.BlockSpec((d, d), lambda i: (0, 0)),
            pl.BlockSpec((1, d), lambda i: (0, 0)),
            pl.BlockSpec((d, d), lambda i: (0, 0)),
            pl.BlockSpec((1, d), lambda i: (0, 0)),
            pl.BlockSpec((d, d), lambda i: (0, 0)),
            pl.BlockSpec((1, d), lambda i: (0, 0)),
        ],
        out_specs=pl.BlockSpec((tile, d), lambda i: (i, 0)),
        out_shape=jax.ShapeDtypeStruct((R, d), jnp.bfloat16),
        compiler_params=pltpu.CompilerParams(dimension_semantics=("parallel",)),
    )(wins, wd, p['char_w'], p['char_b'], p['proj_ch_w'], p['proj_wd_w'],
      hw1['lin_w'], hw1['lin_b'], hw1['gate_w'], hw1['gate_b'],
      hw2['lin_w'], hw2['lin_b'], hw2['gate_w'], hw2['gate_b'])
    return emb.reshape(B, L, d)                    # channels-last stream


def encoder_block(bp, x, keypad3, pos, r_w_bias, r_r_bias):
    """layers.Encoder block: nconv x (LN->dwsep conv->res), LN->attn->res, LN->FFN->res."""
    out = x
    for cp in bp['convs']:
        out = _conv_block(out, cp['ln_g'], cp['ln_b'],
                          cp['dw_w'], cp['pw_w'], cp['pw_b'])
    ap = bp['attn']
    dh = ap['q_w'].shape[2]
    q, k, v, bd = _attn_qkv(out, ap, bp['ln_att_g'], bp['ln_att_b'],
                            pos, r_w_bias, r_r_bias)
    bd = rel_shift(bd)                             # XLA skew between kernels
    out = _attn_core(out, q, k, v, bd, keypad3, ap['o_w'],
                     scale=1.0 / float(dh) ** 0.5)
    out = _ffn_block(out, bp['ln_ffn_g'], bp['ln_ffn_b'],
                     bp['ffn1_w'], bp['ffn1_b'], bp['ffn2_w'], bp['ffn2_b'])
    return out


@jax.jit
def encoder_stack_fwd(blocks, x, keypad3, r_w_bias, r_r_bias):
    """_forwardEmb / _forwardEnc body (mem_len==0 -> no mems)."""
    B, L, D = x.shape
    pos = positional_embedding(L, D).astype(jnp.bfloat16)
    # TODO(synk): eval-path dec_attn_mask in the reference is degenerate for
    # mem_len==0; training-path triu(diagonal=1) causal mask is used instead.
    out = x
    for bp in blocks:
        out = encoder_block(bp, out, keypad3, pos, r_w_bias, r_r_bias)
    return out


@jax.jit
def cq_attention_fwd(p, C, Q, maskC, maskQ):
    """layers.CQAttention + fused cq_resizer."""
    B, Lc, D = C.shape
    Lq = Q.shape[1]
    cm = maskC[:, :, None]                         # (B, Lc, 1)
    qm = maskQ[:, None, :]                         # (B, 1, Lq)
    return pl.pallas_call(
        _cq_attention_kernel,
        grid=(B,),
        in_specs=[
            pl.BlockSpec((1, Lc, D), lambda i: (i, 0, 0)),
            pl.BlockSpec((1, Lq, D), lambda i: (i, 0, 0)),
            pl.BlockSpec((1, Lc, 1), lambda i: (i, 0, 0)),
            pl.BlockSpec((1, 1, Lq), lambda i: (i, 0, 0)),
            pl.BlockSpec((1, D), lambda i: (0, 0)),
            pl.BlockSpec((1, D), lambda i: (0, 0)),
            pl.BlockSpec((1, D), lambda i: (0, 0)),
            pl.BlockSpec((1, 1), lambda i: (0, 0)),
            pl.BlockSpec((4, D, D), lambda i: (0, 0, 0)),
        ],
        out_specs=pl.BlockSpec((1, Lc, D), lambda i: (i, 0, 0)),
        out_shape=jax.ShapeDtypeStruct((B, Lc, D), jnp.bfloat16),
        compiler_params=pltpu.CompilerParams(dimension_semantics=("parallel",)),
    )(C, Q, cm, qm, p['w4C'], p['w4Q'], p['w4mlu'], p['bias'], p['resizer_w'])


@jax.jit
def qa_output_fwd(p, M1, M2, M3, maskC):
    """layers.QAOutput: pointer logits + masked log-softmax, one kernel."""
    B, Lc, D = M1.shape
    m3 = maskC[:, None, :]                         # (B, 1, Lc)
    p1, p2 = pl.pallas_call(
        _qa_output_kernel,
        grid=(B,),
        in_specs=[
            pl.BlockSpec((1, Lc, D), lambda i: (i, 0, 0)),
            pl.BlockSpec((1, Lc, D), lambda i: (i, 0, 0)),
            pl.BlockSpec((1, Lc, D), lambda i: (i, 0, 0)),
            pl.BlockSpec((1, 1, Lc), lambda i: (i, 0, 0)),
            pl.BlockSpec((2, 1, D), lambda i: (0, 0, 0)),
            pl.BlockSpec((2, 1, D), lambda i: (0, 0, 0)),
        ],
        out_specs=(
            pl.BlockSpec((1, 1, Lc), lambda i: (i, 0, 0)),
            pl.BlockSpec((1, 1, Lc), lambda i: (i, 0, 0)),
        ),
        out_shape=(
            jax.ShapeDtypeStruct((B, 1, Lc), jnp.float32),
            jax.ShapeDtypeStruct((B, 1, Lc), jnp.float32),
        ),
        compiler_params=pltpu.CompilerParams(dimension_semantics=("parallel",)),
    )(M1, M2, M3, m3, p['w1'], p['w2'])
    return p1[:, 0, :], p2[:, 0, :]


def qanet_forward(params, Cword, Cchar, Qword, Qchar, cfg):
    pad = cfg['pad']
    maskC = (Cword != pad).astype(jnp.float32)
    maskQ = (Qword != pad).astype(jnp.float32)
    maskC3 = maskC[:, None, :]
    maskQ3 = maskQ[:, None, :]

    # 1. Input embedding (shared weights for context / query)
    C = embedding_fwd(params['emb'], params['word_emb'], params['char_emb'],
                      Cword, Cchar)
    Q = embedding_fwd(params['emb'], params['word_emb'], params['char_emb'],
                      Qword, Qchar)

    # 2. Embedding encoders
    Ce = encoder_stack_fwd([params['emb_enc']], C, maskC3,
                           params['r_w_bias'], params['r_r_bias'])
    Qe = encoder_stack_fwd([params['emb_enc']], Q, maskQ3,
                           params['r_w_bias'], params['r_r_bias'])

    # 3. Context-query attention (+ fused resizer)
    M0 = cq_attention_fwd(params['cq_att'], Ce, Qe, maskC, maskQ)

    # 4. Model encoder: 7 shared blocks applied three times (one compilation)
    M1 = encoder_stack_fwd(params['model_enc'], M0, maskC3,
                           params['r_w_bias'], params['r_r_bias'])
    M2 = encoder_stack_fwd(params['model_enc'], M1, maskC3,
                           params['r_w_bias'], params['r_r_bias'])
    M3 = encoder_stack_fwd(params['model_enc'], M2, maskC3,
                           params['r_w_bias'], params['r_r_bias'])

    # 5. Output layer
    p1, p2 = qa_output_fwd(params['out'], M1, M2, M3, maskC)
    return p1, p2, (None, None, None)              # mem_len == 0 -> no mems


# ============================================================================
# Deterministic parameter init (weights stored in kernel-friendly layouts)
# ============================================================================

class KeyGen:
    def __init__(self, key):
        self.key = key

    def __call__(self):
        self.key, sub = jax.random.split(self.key)
        return sub


def _w(kg, shape, scale=0.1):
    return jax.random.normal(kg(), shape, dtype=jnp.float32) * scale


def _bf(x):
    return x.astype(jnp.bfloat16)


def make_encoder_params(kg, d, H, dh, d_inner, num_conv, k):
    return {
        'convs': [{
            'ln_g': jnp.ones((1, d), jnp.float32),
            'ln_b': jnp.zeros((1, d), jnp.float32),
            'dw_w': _w(kg, (k, d)),
            'pw_w': _bf(_w(kg, (d, d))),
            'pw_b': jnp.zeros((1, d), jnp.float32),
        } for _ in range(num_conv)],
        'ln_att_g': jnp.ones((1, d), jnp.float32),
        'ln_att_b': jnp.zeros((1, d), jnp.float32),
        'attn': {
            'q_w': _bf(_w(kg, (H, d, dh))),
            'k_w': _bf(_w(kg, (H, d, dh))),
            'v_w': _bf(_w(kg, (H, d, dh))),
            'r_w': _bf(_w(kg, (H, d, dh))),
            'o_w': _bf(_w(kg, (H, dh, d))),
        },
        'ln_ffn_g': jnp.ones((1, d), jnp.float32),
        'ln_ffn_b': jnp.zeros((1, d), jnp.float32),
        'ffn1_w': _bf(_w(kg, (d, d_inner))),
        'ffn1_b': jnp.zeros((1, d_inner), jnp.float32),
        'ffn2_w': _bf(_w(kg, (d_inner, d))),
        'ffn2_b': jnp.zeros((1, d), jnp.float32),
    }


def init_qanet_params(key, cfg):
    kg = KeyGen(key)
    d = cfg['d_model']
    H, dh = cfg['num_head'], cfg['d_head']
    d_inner = 4 * d
    wemb, cemb = cfg['wemb_dim'], cfg['cemb_dim']
    params = {
        'word_emb': _w(kg, (cfg['vocab_w'], wemb), 1.0),
        'char_emb': _w(kg, (cfg['vocab_c'], cemb), 1.0),
        'emb': {
            'char_w': _bf(_w(kg, (5 * cemb, d))),
            'char_b': jnp.zeros((1, d), jnp.float32),
            'proj_ch_w': _bf(_w(kg, (d, d))),
            'proj_wd_w': _bf(_w(kg, (wemb, d))),
            'highway': [{
                'lin_w': _bf(_w(kg, (d, d))),
                'lin_b': jnp.zeros((1, d), jnp.float32),
                'gate_w': _bf(_w(kg, (d, d))),
                'gate_b': jnp.zeros((1, d), jnp.float32),
            } for _ in range(2)],
        },
        'r_w_bias': _w(kg, (H, 1, dh), 0.02),
        'r_r_bias': _w(kg, (H, 1, dh), 0.02),
        'emb_enc': make_encoder_params(kg, d, H, dh, d_inner, num_conv=4, k=7),
        'cq_att': {
            'w4C': _w(kg, (1, d)),
            'w4Q': _w(kg, (1, d)),
            'w4mlu': _w(kg, (1, d)),
            'bias': jnp.zeros((1, 1), jnp.float32),
            'resizer_w': _bf(_w(kg, (4, d, d))),
        },
        'model_enc': [make_encoder_params(kg, d, H, dh, d_inner, num_conv=2, k=5)
                      for _ in range(7)],
        'out': {'w1': _w(kg, (2, 1, d)), 'w2': _w(kg, (2, 1, d))},
    }
    return params


# ============================================================================
# Main
# ============================================================================

if __name__ == "__main__":
    cfg = dict(d_model=32, num_head=4, d_head=8, wemb_dim=16, cemb_dim=8,
               vocab_w=60, vocab_c=40, LC=16, LQ=8, W=8, pad=0)

    key = jax.random.PRNGKey(0)
    kparam, kdata = jax.random.split(key)
    params = init_qanet_params(kparam, cfg)

    B = 2
    k1, k2, k3, k4 = jax.random.split(kdata, 4)
    Cword = jax.random.randint(k1, (B, cfg['LC']), 1, cfg['vocab_w'], dtype=jnp.int32)
    Qword = jax.random.randint(k2, (B, cfg['LQ']), 1, cfg['vocab_w'], dtype=jnp.int32)
    # introduce some padding tokens to exercise the masking paths
    Cword = Cword.at[:, -2:].set(cfg['pad'])
    Qword = Qword.at[:, -1:].set(cfg['pad'])
    Cchar = jax.random.randint(k3, (B, cfg['LC'], cfg['W']), 1, cfg['vocab_c'],
                               dtype=jnp.int32)
    Qchar = jax.random.randint(k4, (B, cfg['LQ'], cfg['W']), 1, cfg['vocab_c'],
                               dtype=jnp.int32)

    p1, p2, mems = qanet_forward(params, Cword, Cchar, Qword, Qchar, cfg)
    (p1, p2) = jax.block_until_ready((p1, p2))

    assert p1.shape == (B, cfg['LC']) and p2.shape == (B, cfg['LC'])
    assert bool(jnp.all(jnp.isfinite(p1))) and bool(jnp.all(jnp.isfinite(p2)))
    # log-softmax rows over valid positions should (approximately) exp-sum to 1
    assert bool(jnp.allclose(jnp.sum(jnp.exp(p1), axis=1), 1.0, atol=1e-3))
    assert bool(jnp.allclose(jnp.sum(jnp.exp(p2), axis=1), 1.0, atol=1e-3))
    print("KERNEL_OK")
</pallas_src>

<mosaic_0001>
module attributes {stable_mosaic.version = 11 : i64} {
  func.func @_embedding_kernel(%arg0: i32, %arg1: memref<4x8x40xbf16, #tpu.memory_space<vmem>>, %arg2: memref<8x16xbf16, #tpu.memory_space<vmem>>, %arg3: memref<40x32xbf16, #tpu.memory_space<vmem>>, %arg4: memref<1x32xf32, #tpu.memory_space<vmem>>, %arg5: memref<32x32xbf16, #tpu.memory_space<vmem>>, %arg6: memref<16x32xbf16, #tpu.memory_space<vmem>>, %arg7: memref<32x32xbf16, #tpu.memory_space<vmem>>, %arg8: memref<1x32xf32, #tpu.memory_space<vmem>>, %arg9: memref<32x32xbf16, #tpu.memory_space<vmem>>, %arg10: memref<1x32xf32, #tpu.memory_space<vmem>>, %arg11: memref<32x32xbf16, #tpu.memory_space<vmem>>, %arg12: memref<1x32xf32, #tpu.memory_space<vmem>>, %arg13: memref<32x32xbf16, #tpu.memory_space<vmem>>, %arg14: memref<1x32xf32, #tpu.memory_space<vmem>>, %arg15: memref<8x32xbf16, #tpu.memory_space<vmem>>) attributes {dimension_semantics = [#tpu.dimension_semantics<parallel>], iteration_bounds = array<i64: 4>, scalar_prefetch = 0 : i64, scratch_operands = 0 : i64, tpu.core_type = #tpu.core_type<tc>, window_params = [{transform_indices = @transform_0, window_bounds = array<i64: 4, 8, 40>}, {transform_indices = @transform_1, window_bounds = array<i64: 8, 16>}, {pipeline_mode = #tpu.pipeline_mode<synchronous>, transform_indices = @transform_2, window_bounds = array<i64: 40, 32>}, {pipeline_mode = #tpu.pipeline_mode<synchronous>, transform_indices = @transform_3, window_bounds = array<i64: 1, 32>}, {pipeline_mode = #tpu.pipeline_mode<synchronous>, transform_indices = @transform_4, window_bounds = array<i64: 32, 32>}, {pipeline_mode = #tpu.pipeline_mode<synchronous>, transform_indices = @transform_5, window_bounds = array<i64: 16, 32>}, {pipeline_mode = #tpu.pipeline_mode<synchronous>, transform_indices = @transform_6, window_bounds = array<i64: 32, 32>}, {pipeline_mode = #tpu.pipeline_mode<synchronous>, transform_indices = @transform_7, window_bounds = array<i64: 1, 32>}, {pipeline_mode = #tpu.pipeline_mode<synchronous>, transform_indices = @transform_8, window_bounds = array<i64: 32, 32>}, {pipeline_mode = #tpu.pipeline_mode<synchronous>, transform_indices = @transform_9, window_bounds = array<i64: 1, 32>}, {pipeline_mode = #tpu.pipeline_mode<synchronous>, transform_indices = @transform_10, window_bounds = array<i64: 32, 32>}, {pipeline_mode = #tpu.pipeline_mode<synchronous>, transform_indices = @transform_11, window_bounds = array<i64: 1, 32>}, {pipeline_mode = #tpu.pipeline_mode<synchronous>, transform_indices = @transform_12, window_bounds = array<i64: 32, 32>}, {pipeline_mode = #tpu.pipeline_mode<synchronous>, transform_indices = @transform_13, window_bounds = array<i64: 1, 32>}, {transform_indices = @transform_14, window_bounds = array<i64: 8, 32>}]} {
    %c0 = arith.constant 0 : index
    %c0_0 = arith.constant 0 : index
    %0 = vector.load %arg4[%c0, %c0_0] : memref<1x32xf32, #tpu.memory_space<vmem>>, vector<1x32xf32>
    %c0_1 = arith.constant 0 : index
    %c0_2 = arith.constant 0 : index
    %c0_3 = arith.constant 0 : index
    %1 = vector.load %arg1[%c0_1, %c0_2, %c0_3] : memref<4x8x40xbf16, #tpu.memory_space<vmem>>, vector<1x8x40xbf16>
    %2 = vector.shape_cast %1 : vector<1x8x40xbf16> to vector<8x40xbf16>
    %c0_4 = arith.constant 0 : index
    %c0_5 = arith.constant 0 : index
    %3 = vector.load %arg3[%c0_4, %c0_5] : memref<40x32xbf16, #tpu.memory_space<vmem>>, vector<40x32xbf16>
    %cst = arith.constant dense<0.000000e+00> : vector<8x32xf32>
    %4 = tpu.matmul %2, %3, %cst {dimension_numbers = #tpu.dot_dimension_numbers<[1], [0], [0], [1], [0, 0, 1, 1], [], []>} : vector<8x40xbf16>, vector<40x32xbf16>, vector<8x32xf32> -> vector<8x32xf32>
    %5 = vector.broadcast %0 : vector<1x32xf32> to vector<8x32xf32>
    %6 = arith.addf %4, %5 : vector<8x32xf32>
    %cst_6 = arith.constant 0.000000e+00 : f32
    %7 = vector.broadcast %cst_6 : f32 to vector<8x32xf32>
    %8 = arith.maximumf %6, %7 : vector<8x32xf32>
    %c1 = arith.constant 1 : index
    %c0_7 = arith.constant 0 : index
    %c0_8 = arith.constant 0 : index
    %9 = vector.load %arg1[%c1, %c0_7, %c0_8] : memref<4x8x40xbf16, #tpu.memory_space<vmem>>, vector<1x8x40xbf16>
    %10 = vector.shape_cast %9 : vector<1x8x40xbf16> to vector<8x40xbf16>
    %c0_9 = arith.constant 0 : index
    %c0_10 = arith.constant 0 : index
    %11 = vector.load %arg3[%c0_9, %c0_10] : memref<40x32xbf16, #tpu.memory_space<vmem>>, vector<40x32xbf16>
    %cst_11 = arith.constant dense<0.000000e+00> : vector<8x32xf32>
    %12 = tpu.matmul %10, %11, %cst_11 {dimension_numbers = #tpu.dot_dimension_numbers<[1], [0], [0], [1], [0, 0, 1, 1], [], []>} : vector<8x40xbf16>, vector<40x32xbf16>, vector<8x32xf32> -> vector<8x32xf32>
    %13 = vector.broadcast %0 : vector<1x32xf32> to vector<8x32xf32>
    %14 = arith.addf %12, %13 : vector<8x32xf32>
    %cst_12 = arith.constant 0.000000e+00 : f32
    %15 = vector.broadcast %cst_12 : f32 to vector<8x32xf32>
    %16 = arith.maximumf %14, %15 : vector<8x32xf32>
    %17 = arith.maximumf %8, %16 : vector<8x32xf32>
    %c2 = arith.constant 2 : index
    %c0_13 = arith.constant 0 : index
    %c0_14 = arith.constant 0 : index
    %18 = vector.load %arg1[%c2, %c0_13, %c0_14] : memref<4x8x40xbf16, #tpu.memory_space<vmem>>, vector<1x8x40xbf16>
    %19 = vector.shape_cast %18 : vector<1x8x40xbf16> to vector<8x40xbf16>
    %c0_15 = arith.constant 0 : index
    %c0_16 = arith.constant 0 : index
    %20 = vector.load %arg3[%c0_15, %c0_16] : memref<40x32xbf16, #tpu.memory_space<vmem>>, vector<40x32xbf16>
    %cst_17 = arith.constant dense<0.000000e+00> : vector<8x32xf32>
    %21 = tpu.matmul %19, %20, %cst_17 {dimension_numbers = #tpu.dot_dimension_numbers<[1], [0], [0], [1], [0, 0, 1, 1], [], []>} : vector<8x40xbf16>, vector<40x32xbf16>, vector<8x32xf32> -> vector<8x32xf32>
    %22 = vector.broadcast %0 : vector<1x32xf32> to vector<8x32xf32>
    %23 = arith.addf %21, %22 : vector<8x32xf32>
    %cst_18 = arith.constant 0.000000e+00 : f32
    %24 = vector.broadcast %cst_18 : f32 to vector<8x32xf32>
    %25 = arith.maximumf %23, %24 : vector<8x32xf32>
    %26 = arith.maximumf %17, %25 : vector<8x32xf32>
    %c3 = arith.constant 3 : index
    %c0_19 = arith.constant 0 : index
    %c0_20 = arith.constant 0 : index
    %27 = vector.load %arg1[%c3, %c0_19, %c0_20] : memref<4x8x40xbf16, #tpu.memory_space<vmem>>, vector<1x8x40xbf16>
    %28 = vector.shape_cast %27 : vector<1x8x40xbf16> to vector<8x40xbf16>
    %c0_21 = arith.constant 0 : index
    %c0_22 = arith.constant 0 : index
    %29 = vector.load %arg3[%c0_21, %c0_22] : memref<40x32xbf16, #tpu.memory_space<vmem>>, vector<40x32xbf16>
    %cst_23 = arith.constant dense<0.000000e+00> : vector<8x32xf32>
    %30 = tpu.matmul %28, %29, %cst_23 {dimension_numbers = #tpu.dot_dimension_numbers<[1], [0], [0], [1], [0, 0, 1, 1], [], []>} : vector<8x40xbf16>, vector<40x32xbf16>, vector<8x32xf32> -> vector<8x32xf32>
    %31 = vector.broadcast %0 : vector<1x32xf32> to vector<8x32xf32>
    %32 = arith.addf %30, %31 : vector<8x32xf32>
    %cst_24 = arith.constant 0.000000e+00 : f32
    %33 = vector.broadcast %cst_24 : f32 to vector<8x32xf32>
    %34 = arith.maximumf %32, %33 : vector<8x32xf32>
    %35 = arith.maximumf %26, %34 : vector<8x32xf32>
    %36 = arith.truncf %35 : vector<8x32xf32> to vector<8x32xbf16>
    %c0_25 = arith.constant 0 : index
    %c0_26 = arith.constant 0 : index
    %37 = vector.load %arg5[%c0_25, %c0_26] : memref<32x32xbf16, #tpu.memory_space<vmem>>, vector<32x32xbf16>
    %cst_27 = arith.constant dense<0.000000e+00> : vector<8x32xf32>
    %38 = tpu.matmul %36, %37, %cst_27 {dimension_numbers = #tpu.dot_dimension_numbers<[1], [0], [0], [1], [0, 0, 1, 1], [], []>} : vector<8x32xbf16>, vector<32x32xbf16>, vector<8x32xf32> -> vector<8x32xf32>
    %c0_28 = arith.constant 0 : index
    %c0_29 = arith.constant 0 : index
    %39 = vector.load %arg2[%c0_28, %c0_29] : memref<8x16xbf16, #tpu.memory_space<vmem>>, vector<8x16xbf16>
    %c0_30 = arith.constant 0 : index
    %c0_31 = arith.constant 0 : index
    %40 = vector.load %arg6[%c0_30, %c0_31] : memref<16x32xbf16, #tpu.memory_space<vmem>>, vector<16x32xbf16>
    %cst_32 = arith.constant dense<0.000000e+00> : vector<8x32xf32>
    %41 = tpu.matmul %39, %40, %cst_32 {dimension_numbers = #tpu.dot_dimension_numbers<[1], [0], [0], [1], [0, 0, 1, 1], [], []>} : vector<8x16xbf16>, vector<16x32xbf16>, vector<8x32xf32> -> vector<8x32xf32>
    %42 = arith.addf %38, %41 : vector<8x32xf32>
    %43 = arith.truncf %42 : vector<8x32xf32> to vector<8x32xbf16>
    %c0_33 = arith.constant 0 : index
    %c0_34 = arith.constant 0 : index
    %44 = vector.load %arg9[%c0_33, %c0_34] : memref<32x32xbf16, #tpu.memory_space<vmem>>, vector<32x32xbf16>
    %cst_35 = arith.constant dense<0.000000e+00> : vector<8x32xf32>
    %45 = tpu.matmul %43, %44, %cst_35 {dimension_numbers = #tpu.dot_dimension_numbers<[1], [0], [0], [1], [0, 0, 1, 1], [], []>} : vector<8x32xbf16>, vector<32x32xbf16>, vector<8x32xf32> -> vector<8x32xf32>
    %c0_36 = arith.constant 0 : index
    %c0_37 = arith.constant 0 : index
    %46 = vector.load %arg10[%c0_36, %c0_37] : memref<1x32xf32, #tpu.memory_space<vmem>>, vector<1x32xf32>
    %47 = vector.broadcast %46 : vector<1x32xf32> to vector<8x32xf32>
    %48 = arith.addf %45, %47 : vector<8x32xf32>
    %cst_38 = arith.constant 0.000000e+00 : f32
    %49 = vector.broadcast %cst_38 : f32 to vector<8x32xf32>
    %50 = arith.subf %49, %48 : vector<8x32xf32>
    %51 = math.exp %50 : vector<8x32xf32>
    %cst_39 = arith.constant 1.000000e+00 : f32
    %52 = vector.broadcast %cst_39 : f32 to vector<8x32xf32>
    %53 = arith.addf %52, %51 : vector<8x32xf32>
    %cst_40 = arith.constant 1.000000e+00 : f32
    %54 = vector.broadcast %cst_40 : f32 to vector<8x32xf32>
    %55 = arith.divf %54, %53 : vector<8x32xf32>
    %c0_41 = arith.constant 0 : index
    %c0_42 = arith.constant 0 : index
    %56 = vector.load %arg7[%c0_41, %c0_42] : memref<32x32xbf16, #tpu.memory_space<vmem>>, vector<32x32xbf16>
    %cst_43 = arith.constant dense<0.000000e+00> : vector<8x32xf32>
    %57 = tpu.matmul %43, %56, %cst_43 {dimension_numbers = #tpu.dot_dimension_numbers<[1], [0], [0], [1], [0, 0, 1, 1], [], []>} : vector<8x32xbf16>, vector<32x32xbf16>, vector<8x32xf32> -> vector<8x32xf32>
    %c0_44 = arith.constant 0 : index
    %c0_45 = arith.constant 0 : index
    %58 = vector.load %arg8[%c0_44, %c0_45] : memref<1x32xf32, #tpu.memory_space<vmem>>, vector<1x32xf32>
    %59 = vector.broadcast %58 : vector<1x32xf32> to vector<8x32xf32>
    %60 = arith.addf %57, %59 : vector<8x32xf32>
    %cst_46 = arith.constant 0.000000e+00 : f32
    %61 = vector.broadcast %cst_46 : f32 to vector<8x32xf32>
    %62 = arith.maximumf %60, %61 : vector<8x32xf32>
    %63 = arith.mulf %55, %62 : vector<8x32xf32>
    %cst_47 = arith.constant 1.000000e+00 : f32
    %64 = vector.broadcast %cst_47 : f32 to vector<8x32xf32>
    %65 = arith.subf %64, %55 : vector<8x32xf32>
    %66 = arith.mulf %65, %42 : vector<8x32xf32>
    %67 = arith.addf %63, %66 : vector<8x32xf32>
    %68 = arith.truncf %67 : vector<8x32xf32> to vector<8x32xbf16>
    %c0_48 = arith.constant 0 : index
    %c0_49 = arith.constant 0 : index
    %69 = vector.load %arg13[%c0_48, %c0_49] : memref<32x32xbf16, #tpu.memory_space<vmem>>, vector<32x32xbf16>
    %cst_50 = arith.constant dense<0.000000e+00> : vector<8x32xf32>
    %70 = tpu.matmul %68, %69, %cst_50 {dimension_numbers = #tpu.dot_dimension_numbers<[1], [0], [0], [1], [0, 0, 1, 1], [], []>} : vector<8x32xbf16>, vector<32x32xbf16>, vector<8x32xf32> -> vector<8x32xf32>
    %c0_51 = arith.constant 0 : index
    %c0_52 = arith.constant 0 : index
    %71 = vector.load %arg14[%c0_51, %c0_52] : memref<1x32xf32, #tpu.memory_space<vmem>>, vector<1x32xf32>
    %72 = vector.broadcast %71 : vector<1x32xf32> to vector<8x32xf32>
    %73 = arith.addf %70, %72 : vector<8x32xf32>
    %cst_53 = arith.constant 0.000000e+00 : f32
    %74 = vector.broadcast %cst_53 : f32 to vector<8x32xf32>
    %75 = arith.subf %74, %73 : vector<8x32xf32>
    %76 = math.exp %75 : vector<8x32xf32>
    %cst_54 = arith.constant 1.000000e+00 : f32
    %77 = vector.broadcast %cst_54 : f32 to vector<8x32xf32>
    %78 = arith.addf %77, %76 : vector<8x32xf32>
    %cst_55 = arith.constant 1.000000e+00 : f32
    %79 = vector.broadcast %cst_55 : f32 to vector<8x32xf32>
    %80 = arith.divf %79, %78 : vector<8x32xf32>
    %c0_56 = arith.constant 0 : index
    %c0_57 = arith.constant 0 : index
    %81 = vector.load %arg11[%c0_56, %c0_57] : memref<32x32xbf16, #tpu.memory_space<vmem>>, vector<32x32xbf16>
    %cst_58 = arith.constant dense<0.000000e+00> : vector<8x32xf32>
    %82 = tpu.matmul %68, %81, %cst_58 {dimension_numbers = #tpu.dot_dimension_numbers<[1], [0], [0], [1], [0, 0, 1, 1], [], []>} : vector<8x32xbf16>, vector<32x32xbf16>, vector<8x32xf32> -> vector<8x32xf32>
    %c0_59 = arith.constant 0 : index
    %c0_60 = arith.constant 0 : index
    %83 = vector.load %arg12[%c0_59, %c0_60] : memref<1x32xf32, #tpu.memory_space<vmem>>, vector<1x32xf32>
    %84 = vector.broadcast %83 : vector<1x32xf32> to vector<8x32xf32>
    %85 = arith.addf %82, %84 : vector<8x32xf32>
    %cst_61 = arith.constant 0.000000e+00 : f32
    %86 = vector.broadcast %cst_61 : f32 to vector<8x32xf32>
    %87 = arith.maximumf %85, %86 : vector<8x32xf32>
    %88 = arith.mulf %80, %87 : vector<8x32xf32>
    %cst_62 = arith.constant 1.000000e+00 : f32
    %89 = vector.broadcast %cst_62 : f32 to vector<8x32xf32>
    %90 = arith.subf %89, %80 : vector<8x32xf32>
    %91 = arith.mulf %90, %67 : vector<8x32xf32>
    %92 = arith.addf %88, %91 : vector<8x32xf32>
    %93 = arith.truncf %92 : vector<8x32xf32> to vector<8x32xbf16>
    %c0_63 = arith.constant 0 : index
    %c0_64 = arith.constant 0 : index
    %94 = vector.load %arg15[%c0_63, %c0_64] : memref<8x32xbf16, #tpu.memory_space<vmem>>, vector<8x32xbf16>
    tpu.vector_store %arg15[%c0_63, %c0_64], %93 {strides = array<i32>} : memref<8x32xbf16, #tpu.memory_space<vmem>>, vector<8x32xbf16>,
    return
  }
  func.func @transform_0(%arg0: i32) -> (i32, i32, i32) {
    %c0_i32 = arith.constant 0 : i32
    %c0_i32_0 = arith.constant 0 : i32
    %c0_i32_1 = arith.constant 0 : i32
    return %c0_i32, %arg0, %c0_i32_0 : i32, i32, i32
  }
  func.func @transform_1(%arg0: i32) -> (i32, i32) {
    %c0_i32 = arith.constant 0 : i32
    %c0_i32_0 = arith.constant 0 : i32
    return %arg0, %c0_i32 : i32, i32
  }
  func.func @transform_2(%arg0: i32) -> (i32, i32) {
    %c0_i32 = arith.constant 0 : i32
    %c0_i32_0 = arith.constant 0 : i32
    %c0_i32_1 = arith.constant 0 : i32
    return %c0_i32, %c0_i32_0 : i32, i32
  }
  func.func @transform_3(%arg0: i32) -> (i32, i32) {
    %c0_i32 = arith.constant 0 : i32
    %c0_i32_0 = arith.constant 0 : i32
    %c0_i32_1 = arith.constant 0 : i32
    return %c0_i32, %c0_i32_0 : i32, i32
  }
  func.func @transform_4(%arg0: i32) -> (i32, i32) {
    %c0_i32 = arith.constant 0 : i32
    %c0_i32_0 = arith.constant 0 : i32
    %c0_i32_1 = arith.constant 0 : i32
    return %c0_i32, %c0_i32_0 : i32, i32
  }
  func.func @transform_5(%arg0: i32) -> (i32, i32) {
    %c0_i32 = arith.constant 0 : i32
    %c0_i32_0 = arith.constant 0 : i32
    %c0_i32_1 = arith.constant 0 : i32
    return %c0_i32, %c0_i32_0 : i32, i32
  }
  func.func @transform_6(%arg0: i32) -> (i32, i32) {
    %c0_i32 = arith.constant 0 : i32
    %c0_i32_0 = arith.constant 0 : i32
    %c0_i32_1 = arith.constant 0 : i32
    return %c0_i32, %c0_i32_0 : i32, i32
  }
  func.func @transform_7(%arg0: i32) -> (i32, i32) {
    %c0_i32 = arith.constant 0 : i32
    %c0_i32_0 = arith.constant 0 : i32
    %c0_i32_1 = arith.constant 0 : i32
    return %c0_i32, %c0_i32_0 : i32, i32
  }
  func.func @transform_8(%arg0: i32) -> (i32, i32) {
    %c0_i32 = arith.constant 0 : i32
    %c0_i32_0 = arith.constant 0 : i32
    %c0_i32_1 = arith.constant 0 : i32
    return %c0_i32, %c0_i32_0 : i32, i32
  }
  func.func @transform_9(%arg0: i32) -> (i32, i32) {
    %c0_i32 = arith.constant 0 : i32
    %c0_i32_0 = arith.constant 0 : i32
    %c0_i32_1 = arith.constant 0 : i32
    return %c0_i32, %c0_i32_0 : i32, i32
  }
  func.func @transform_10(%arg0: i32) -> (i32, i32) {
    %c0_i32 = arith.constant 0 : i32
    %c0_i32_0 = arith.constant 0 : i32
    %c0_i32_1 = arith.constant 0 : i32
    return %c0_i32, %c0_i32_0 : i32, i32
  }
  func.func @transform_11(%arg0: i32) -> (i32, i32) {
    %c0_i32 = arith.constant 0 : i32
    %c0_i32_0 = arith.constant 0 : i32
    %c0_i32_1 = arith.constant 0 : i32
    return %c0_i32, %c0_i32_0 : i32, i32
  }
  func.func @transform_12(%arg0: i32) -> (i32, i32) {
    %c0_i32 = arith.constant 0 : i32
    %c0_i32_0 = arith.constant 0 : i32
    %c0_i32_1 = arith.constant 0 : i32
    return %c0_i32, %c0_i32_0 : i32, i32
  }
  func.func @transform_13(%arg0: i32) -> (i32, i32) {
    %c0_i32 = arith.constant 0 : i32
    %c0_i32_0 = arith.constant 0 : i32
    %c0_i32_1 = arith.constant 0 : i32
    return %c0_i32, %c0_i32_0 : i32, i32
  }
  func.func @transform_14(%arg0: i32) -> (i32, i32) {
    %c0_i32 = arith.constant 0 : i32
    %c0_i32_0 = arith.constant 0 : i32
    return %arg0, %c0_i32 : i32, i32
  }
}

</mosaic_0001>

<llo_original>
// kernel: embedding_fwd.1
$region0: #{embedding_fwd.1}
  #allocation0 [shape = 'u32[]', space=smem, size = 0x4, offset = 0x4, fixed_abs, tag = 'smem constant byte address 0x4 - core index']
  #allocation1 [shape = 'u32[144,128]{1,0:T(1,128)}', space=vmem, size = 0x12000, scoped, tag = 'internal scratch']
  %s0 = inlined_call_operand.vmem [shape: bf16[4,32,40], index: 0, kind: input, shape index: {}]
  %s1 = inlined_call_operand.vmem [shape: bf16[32,16], index: 1, kind: input, shape index: {}]
  %s2 = inlined_call_operand.vmem [shape: bf16[40,32], index: 2, kind: input, shape index: {}]
  %s3 = inlined_call_operand.vmem [shape: f32[1,32], index: 3, kind: input, shape index: {}]
  %s4 = inlined_call_operand.vmem [shape: bf16[32,32], index: 4, kind: input, shape index: {}]
  %s5 = inlined_call_operand.vmem [shape: bf16[16,32], index: 5, kind: input, shape index: {}]
  %s6 = inlined_call_operand.vmem [shape: bf16[32,32], index: 6, kind: input, shape index: {}]
  %s7 = inlined_call_operand.vmem [shape: f32[1,32], index: 7, kind: input, shape index: {}]
  %s8 = inlined_call_operand.vmem [shape: bf16[32,32], index: 8, kind: input, shape index: {}]
  %s9 = inlined_call_operand.vmem [shape: f32[1,32], index: 9, kind: input, shape index: {}]
  %s10 = inlined_call_operand.vmem [shape: bf16[32,32], index: 10, kind: input, shape index: {}]
  %s11 = inlined_call_operand.vmem [shape: f32[1,32], index: 11, kind: input, shape index: {}]
  %s12 = inlined_call_operand.vmem [shape: bf16[32,32], index: 12, kind: input, shape index: {}]
  %s13 = inlined_call_operand.vmem [shape: f32[1,32], index: 13, kind: input, shape index: {}]
  %s14 = inlined_call_operand.hbm [shape: bf16[32,32], index: 14, kind: output, shape index: {}]
  %s15 = sld [smem:[#allocation0]]
  $region130: #{embedding_fwd.1} parent=0
    _
  %s17 = ssub.s32 1, %s15
  %s18 = scalar_select 0, %s17, %s15
  $region1: #{embedding_fwd.1} parent=0
    #allocation2 [shape = 'u8[16384]{0}', space=vmem, size = 0x4000, scoped, tag = 'input window, operand 0']
    #allocation3 [shape = 'u8[4096]{0}', space=vmem, size = 0x1000, scoped, tag = 'output window, operand 0']
    #allocation4 [shape = 's32[2]{0}', space=sflag, size = 0x8, scoped, tag = 'scoped memory for embedding_fwd.1']
    %19 = vsyncpa [#allocation4], 0
    %s20 = scalar_lea.sflag [#allocation4], 1
    %21 = vsyncpa %s20, 0
    loop: start=0, step=1, limit=6
    $region2: #{embedding_fwd.1} parent=1 // loop_pre_header
      _
    $region3: #{embedding_fwd.1} parent=1 // loop_header
      %s23 = sphi 0, %s27
      %p24 = scmp.ge.s32.totalorder %s23, 6
      %s33 = sphi 0, %s35
      %s36 = sphi 0, %s33
      %s37 = sphi 0, %s36
      %s53 = sphi 0, %s37
      %s59 = sphi 0, %s61
      %s62 = sphi 0, %s59
      %s63 = sphi 0, %s62
      %s79 = sphi 0, %s63
      %s83 = sphi 0, %s83
      %s85 = sphi 0, %s83
      %s86 = sphi 0, %s85
      %s100 = sphi 0, %s86
      %s104 = sphi 0, %s104
      %s106 = sphi 0, %s104
      %s107 = sphi 0, %s106
      %s121 = sphi 0, %s107
      %s125 = sphi 0, %s125
      %s127 = sphi 0, %s125
      %s128 = sphi 0, %s127
      %s142 = sphi 0, %s128
      %s146 = sphi 0, %s146
      %s148 = sphi 0, %s146
      %s149 = sphi 0, %s148
      %s163 = sphi 0, %s149
      %s167 = sphi 0, %s167
      %s169 = sphi 0, %s167
      %s170 = sphi 0, %s169
      %s184 = sphi 0, %s170
      %s188 = sphi 0, %s188
      %s190 = sphi 0, %s188
      %s191 = sphi 0, %s190
      %s205 = sphi 0, %s191
      %s209 = sphi 0, %s209
      %s211 = sphi 0, %s209
      %s212 = sphi 0, %s211
      %s226 = sphi 0, %s212
      %s230 = sphi 0, %s230
      %s232 = sphi 0, %s230
      %s233 = sphi 0, %s232
      %s247 = sphi 0, %s233
      %s251 = sphi 0, %s251
      %s253 = sphi 0, %s251
      %s254 = sphi 0, %s253
      %s268 = sphi 0, %s254
      %s272 = sphi 0, %s272
      %s274 = sphi 0, %s272
      %s275 = sphi 0, %s274
      %s289 = sphi 0, %s275
      %s293 = sphi 0, %s293
      %s295 = sphi 0, %s293
      %s296 = sphi 0, %s295
      %s310 = sphi 0, %s296
      %s314 = sphi 0, %s314
      %s316 = sphi 0, %s314
      %s317 = sphi 0, %s316
      %s331 = sphi 0, %s317
      %s337 = sphi 0, %s339
      %s340 = sphi 0, %s337
      %s341 = sphi 0, %s340
      %s357 = sphi 0, %s341
    $region4: #{embedding_fwd.1} parent=1 // loop_header_branch
      %26 = sbr.rel (%p24) target = $region8
    $region5: #{embedding_fwd.1} parent=1 // loop_body
      %s28 = ssub.s32 %s23, 1
      %s29 = ssub.s32 %s23, 2
      %s30 = sadd.s32 %s23, 1
      %s31 = ssub.s32 %s23, %s30
      %p32 = scmp.eq.s32.totalorder %s31, 0
      %s34 = sadd.s32 %s33, 1
      %s35 = scalar_select %p32, %s33, %s34
      %p38 = pneg %p32
      %p39 = scmp.eq.s32.totalorder %s23, 3
      %p40 = por %p38, %p39
      %p41 = scmp.ne.s32.totalorder %s33, %s36
      %p42 = scmp.eq.s32.totalorder %s23, 0
      %p43 = por %p41, %p42
      %p44 = scmp.ne.s32.totalorder %s33, %s36
      %p45 = scmp.eq.s32.totalorder %s28, 3
      %p46 = por %p44, %p45
      %p47 = scmp.ne.s32.totalorder %s36, %s37
      %p48 = scmp.eq.s32.totalorder %s28, 0
      %p49 = por %p47, %p48
      %p50 = scmp.ne.s32.totalorder %s36, %s37
      %p51 = scmp.eq.s32.totalorder %s29, 3
      %p52 = por %p50, %p51
      %p54 = scmp.ne.s32.totalorder %s37, %s53
      %p55 = scmp.eq.s32.totalorder %s29, 0
      %p56 = por %p54, %p55
      %s57 = ssub.s32 %s23, %s30
      %p58 = scmp.eq.s32.totalorder %s57, 0
      %s60 = sadd.s32 %s59, 1
      %s61 = scalar_select %p58, %s59, %s60
      %p64 = pneg %p58
      %p65 = scmp.eq.s32.totalorder %s23, 3
      %p66 = por %p64, %p65
      %p67 = scmp.ne.s32.totalorder %s59, %s62
      %p68 = scmp.eq.s32.totalorder %s23, 0
      %p69 = por %p67, %p68
      %p70 = scmp.ne.s32.totalorder %s59, %s62
      %p71 = scmp.eq.s32.totalorder %s28, 3
      %p72 = por %p70, %p71
      %p73 = scmp.ne.s32.totalorder %s62, %s63
      %p74 = scmp.eq.s32.totalorder %s28, 0
      %p75 = por %p73, %p74
      %p76 = scmp.ne.s32.totalorder %s62, %s63
      %p77 = scmp.eq.s32.totalorder %s29, 3
      %p78 = por %p76, %p77
      %p80 = scmp.ne.s32.totalorder %s63, %s79
      %p81 = scmp.eq.s32.totalorder %s29, 0
      %p82 = por %p80, %p81
      %s84 = sadd.s32 %s83, 1
      %p87 = scmp.eq.s32.totalorder %s23, 3
      %p88 = scmp.ne.s32.totalorder %s83, %s85
      %p89 = scmp.eq.s32.totalorder %s23, 0
      %p90 = por %p88, %p89
      %p91 = scmp.ne.s32.totalorder %s83, %s85
      %p92 = scmp.eq.s32.totalorder %s28, 3
      %p93 = por %p91, %p92
      %p94 = scmp.ne.s32.totalorder %s85, %s86
      %p95 = scmp.eq.s32.totalorder %s28, 0
      %p96 = por %p94, %p95
      %p97 = scmp.ne.s32.totalorder %s85, %s86
      %p98 = scmp.eq.s32.totalorder %s29, 3
      %p99 = por %p97, %p98
      %p101 = scmp.ne.s32.totalorder %s86, %s100
      %p102 = scmp.eq.s32.totalorder %s29, 0
      %p103 = por %p101, %p102
      %s105 = sadd.s32 %s104, 1
      %p108 = scmp.eq.s32.totalorder %s23, 3
      %p109 = scmp.ne.s32.totalorder %s104, %s106
      %p110 = scmp.eq.s32.totalorder %s23, 0
      %p111 = por %p109, %p110
      %p112 = scmp.ne.s32.totalorder %s104, %s106
      %p113 = scmp.eq.s32.totalorder %s28, 3
      %p114 = por %p112, %p113
      %p115 = scmp.ne.s32.totalorder %s106, %s107
      %p116 = scmp.eq.s32.totalorder %s28, 0
      %p117 = por %p115, %p116
      %p118 = scmp.ne.s32.totalorder %s106, %s107
      %p119 = scmp.eq.s32.totalorder %s29, 3
      %p120 = por %p118, %p119
      %p122 = scmp.ne.s32.totalorder %s107, %s121
      %p123 = scmp.eq.s32.totalorder %s29, 0
      %p124 = por %p122, %p123
      %s126 = sadd.s32 %s125, 1
      %p129 = scmp.eq.s32.totalorder %s23, 3
      %p130 = scmp.ne.s32.totalorder %s125, %s127
      %p131 = scmp.eq.s32.totalorder %s23, 0
      %p132 = por %p130, %p131
      %p133 = scmp.ne.s32.totalorder %s125, %s127
      %p134 = scmp.eq.s32.totalorder %s28, 3
      %p135 = por %p133, %p134
      %p136 = scmp.ne.s32.totalorder %s127, %s128
      %p137 = scmp.eq.s32.totalorder %s28, 0
      %p138 = por %p136, %p137
      %p139 = scmp.ne.s32.totalorder %s127, %s128
      %p140 = scmp.eq.s32.totalorder %s29, 3
      %p141 = por %p139, %p140
      %p143 = scmp.ne.s32.totalorder %s128, %s142
      %p144 = scmp.eq.s32.totalorder %s29, 0
      %p145 = por %p143, %p144
      %s147 = sadd.s32 %s146, 1
      %p150 = scmp.eq.s32.totalorder %s23, 3
      %p151 = scmp.ne.s32.totalorder %s146, %s148
      %p152 = scmp.eq.s32.totalorder %s23, 0
      %p153 = por %p151, %p152
      %p154 = scmp.ne.s32.totalorder %s146, %s148
      %p155 = scmp.eq.s32.totalorder %s28, 3
      %p156 = por %p154, %p155
      %p157 = scmp.ne.s32.totalorder %s148, %s149
      %p158 = scmp.eq.s32.totalorder %s28, 0
      %p159 = por %p157, %p158
      %p160 = scmp.ne.s32.totalorder %s148, %s149
      %p161 = scmp.eq.s32.totalorder %s29, 3
      %p162 = por %p160, %p161
      %p164 = scmp.ne.s32.totalorder %s149, %s163
      %p165 = scmp.eq.s32.totalorder %s29, 0
      %p166 = por %p164, %p165
      %s168 = sadd.s32 %s167, 1
      %p171 = scmp.eq.s32.totalorder %s23, 3
      %p172 = scmp.ne.s32.totalorder %s167, %s169
      %p173 = scmp.eq.s32.totalorder %s23, 0
      %p174 = por %p172, %p173
      %p175 = scmp.ne.s32.totalorder %s167, %s169
      %p176 = scmp.eq.s32.totalorder %s28, 3
      %p177 = por %p175, %p176
      %p178 = scmp.ne.s32.totalorder %s169, %s170
      %p179 = scmp.eq.s32.totalorder %s28, 0
      %p180 = por %p178, %p179
      %p181 = scmp.ne.s32.totalorder %s169, %s170
      %p182 = scmp.eq.s32.totalorder %s29, 3
      %p183 = por %p181, %p182
      %p185 = scmp.ne.s32.totalorder %s170, %s184
      %p186 = scmp.eq.s32.totalorder %s29, 0
      %p187 = por %p185, %p186
      %s189 = sadd.s32 %s188, 1
      %p192 = scmp.eq.s32.totalorder %s23, 3
      %p193 = scmp.ne.s32.totalorder %s188, %s190
      %p194 = scmp.eq.s32.totalorder %s23, 0
      %p195 = por %p193, %p194
      %p196 = scmp.ne.s32.totalorder %s188, %s190
      %p197 = scmp.eq.s32.totalorder %s28, 3
      %p198 = por %p196, %p197
      %p199 = scmp.ne.s32.totalorder %s190, %s191
      %p200 = scmp.eq.s32.totalorder %s28, 0
      %p201 = por %p199, %p200
      %p202 = scmp.ne.s32.totalorder %s190, %s191
      %p203 = scmp.eq.s32.totalorder %s29, 3
      %p204 = por %p202, %p203
      %p206 = scmp.ne.s32.totalorder %s191, %s205
      %p207 = scmp.eq.s32.totalorder %s29, 0
      %p208 = por %p206, %p207
      %s210 = sadd.s32 %s209, 1
      %p213 = scmp.eq.s32.totalorder %s23, 3
      %p214 = scmp.ne.s32.totalorder %s209, %s211
      %p215 = scmp.eq.s32.totalorder %s23, 0
      %p216 = por %p214, %p215
      %p217 = scmp.ne.s32.totalorder %s209, %s211
      %p218 = scmp.eq.s32.totalorder %s28, 3
      %p219 = por %p217, %p218
      %p220 = scmp.ne.s32.totalorder %s211, %s212
      %p221 = scmp.eq.s32.totalorder %s28, 0
      %p222 = por %p220, %p221
      %p223 = scmp.ne.s32.totalorder %s211, %s212
      %p224 = scmp.eq.s32.totalorder %s29, 3
      %p225 = por %p223, %p224
      %p227 = scmp.ne.s32.totalorder %s212, %s226
      %p228 = scmp.eq.s32.totalorder %s29, 0
      %p229 = por %p227, %p228
      %s231 = sadd.s32 %s230, 1
      %p234 = scmp.eq.s32.totalorder %s23, 3
      %p235 = scmp.ne.s32.totalorder %s230, %s232
      %p236 = scmp.eq.s32.totalorder %s23, 0
      %p237 = por %p235, %p236
      %p238 = scmp.ne.s32.totalorder %s230, %s232
      %p239 = scmp.eq.s32.totalorder %s28, 3
      %p240 = por %p238, %p239
      %p241 = scmp.ne.s32.totalorder %s232, %s233
      %p242 = scmp.eq.s32.totalorder %s28, 0
      %p243 = por %p241, %p242
      %p244 = scmp.ne.s32.totalorder %s232, %s233
      %p245 = scmp.eq.s32.totalorder %s29, 3
      %p246 = por %p244, %p245
      %p248 = scmp.ne.s32.totalorder %s233, %s247
      %p249 = scmp.eq.s32.totalorder %s29, 0
      %p250 = por %p248, %p249
      %s252 = sadd.s32 %s251, 1
      %p255 = scmp.eq.s32.totalorder %s23, 3
      %p256 = scmp.ne.s32.totalorder %s251, %s253
      %p257 = scmp.eq.s32.totalorder %s23, 0
      %p258 = por %p256, %p257
      %p259 = scmp.ne.s32.totalorder %s251, %s253
      %p260 = scmp.eq.s32.totalorder %s28, 3
      %p261 = por %p259, %p260
      %p262 = scmp.ne.s32.totalorder %s253, %s254
      %p263 = scmp.eq.s32.totalorder %s28, 0
      %p264 = por %p262, %p263
      %p265 = scmp.ne.s32.totalorder %s253, %s254
      %p266 = scmp.eq.s32.totalorder %s29, 3
      %p267 = por %p265, %p266
      %p269 = scmp.ne.s32.totalorder %s254, %s268
      %p270 = scmp.eq.s32.totalorder %s29, 0
      %p271 = por %p269, %p270
      %s273 = sadd.s32 %s272, 1
      %p276 = scmp.eq.s32.totalorder %s23, 3
      %p277 = scmp.ne.s32.totalorder %s272, %s274
      %p278 = scmp.eq.s32.totalorder %s23, 0
      %p279 = por %p277, %p278
      %p280 = scmp.ne.s32.totalorder %s272, %s274
      %p281 = scmp.eq.s32.totalorder %s28, 3
      %p282 = por %p280, %p281
      %p283 = scmp.ne.s32.totalorder %s274, %s275
      %p284 = scmp.eq.s32.totalorder %s28, 0
      %p285 = por %p283, %p284
      %p286 = scmp.ne.s32.totalorder %s274, %s275
      %p287 = scmp.eq.s32.totalorder %s29, 3
      %p288 = por %p286, %p287
      %p290 = scmp.ne.s32.totalorder %s275, %s289
      %p291 = scmp.eq.s32.totalorder %s29, 0
      %p292 = por %p290, %p291
      %s294 = sadd.s32 %s293, 1
      %p297 = scmp.eq.s32.totalorder %s23, 3
      %p298 = scmp.ne.s32.totalorder %s293, %s295
      %p299 = scmp.eq.s32.totalorder %s23, 0
      %p300 = por %p298, %p299
      %p301 = scmp.ne.s32.totalorder %s293, %s295
      %p302 = scmp.eq.s32.totalorder %s28, 3
      %p303 = por %p301, %p302
      %p304 = scmp.ne.s32.totalorder %s295, %s296
      %p305 = scmp.eq.s32.totalorder %s28, 0
      %p306 = por %p304, %p305
      %p307 = scmp.ne.s32.totalorder %s295, %s296
      %p308 = scmp.eq.s32.totalorder %s29, 3
      %p309 = por %p307, %p308
      %p311 = scmp.ne.s32.totalorder %s296, %s310
      %p312 = scmp.eq.s32.totalorder %s29, 0
      %p313 = por %p311, %p312
      %s315 = sadd.s32 %s314, 1
      %p318 = scmp.eq.s32.totalorder %s23, 3
      %p319 = scmp.ne.s32.totalorder %s314, %s316
      %p320 = scmp.eq.s32.totalorder %s23, 0
      %p321 = por %p319, %p320
      %p322 = scmp.ne.s32.totalorder %s314, %s316
      %p323 = scmp.eq.s32.totalorder %s28, 3
      %p324 = por %p322, %p323
      %p325 = scmp.ne.s32.totalorder %s316, %s317
      %p326 = scmp.eq.s32.totalorder %s28, 0
      %p327 = por %p325, %p326
      %p328 = scmp.ne.s32.totalorder %s316, %s317
      %p329 = scmp.eq.s32.totalorder %s29, 3
      %p330 = por %p328, %p329
      %p332 = scmp.ne.s32.totalorder %s317, %s331
      %p333 = scmp.eq.s32.totalorder %s29, 0
      %p334 = por %p332, %p333
      %s335 = ssub.s32 %s23, %s30
      %p336 = scmp.eq.s32.totalorder %s335, 0
      %s338 = sadd.s32 %s337, 1
      %s339 = scalar_select %p336, %s337, %s338
      %p342 = pneg %p336
      %p343 = scmp.eq.s32.totalorder %s23, 3
      %p344 = por %p342, %p343
      %p345 = scmp.ne.s32.totalorder %s337, %s340
      %p346 = scmp.eq.s32.totalorder %s23, 0
      %p347 = por %p345, %p346
      %p348 = scmp.ne.s32.totalorder %s337, %s340
      %p349 = scmp.eq.s32.totalorder %s28, 3
      %p350 = por %p348, %p349
      %p351 = scmp.ne.s32.totalorder %s340, %s341
      %p352 = scmp.eq.s32.totalorder %s28, 0
      %p353 = por %p351, %p352
      %p354 = scmp.ne.s32.totalorder %s340, %s341
      %p355 = scmp.eq.s32.totalorder %s29, 3
      %p356 = por %p354, %p355
      %p358 = scmp.ne.s32.totalorder %s341, %s357
      %p359 = scmp.eq.s32.totalorder %s29, 0
      %p360 = por %p358, %p359
      %p361 = scmp.le.s32.totalorder 1, %s23
      %p362 = scmp.lt.s32.totalorder %s23, 5
      %p363 = pnand %p361, %p362
      %p364 = pneg %p363
      // Predicated region
      $region9: #{embedding_fwd.1} parent=5 // pred_check
        _
      $region10: #{embedding_fwd.1} parent=5 // pred_check_branch
        %366 = sbr.rel (%p363) target = $region12
      $region11: #{embedding_fwd.1} parent=5 // pred_region
        %s367 = ssub.s32 %s23, 1
        // Predicated region
        $region13: #{embedding_fwd.1} parent=11 // pred_check
          %p368 = pneg %p96
        $region14: #{embedding_fwd.1} parent=11 // pred_check_branch
          %370 = sbr.rel (%p368) target = $region16
        $region15: #{embedding_fwd.1} parent=11 // pred_region
          _
        $region16: #{embedding_fwd.1} parent=11 // pred_fallthru
          _
        // Predicated region
        $region17: #{embedding_fwd.1} parent=11 // pred_check
          %p371 = pneg %p117
        $region18: #{embedding_fwd.1} parent=11 // pred_check_branch
          %373 = sbr.rel (%p371) target = $region20
        $region19: #{embedding_fwd.1} parent=11 // pred_region
          _
        $region20: #{embedding_fwd.1} parent=11 // pred_fallthru
          _
        // Predicated region
        $region21: #{embedding_fwd.1} parent=11 // pred_check
          %p374 = pneg %p138
        $region22: #{embedding_fwd.1} parent=11 // pred_check_branch
          %376 = sbr.rel (%p374) target = $region24
        $region23: #{embedding_fwd.1} parent=11 // pred_region
          _
        $region24: #{embedding_fwd.1} parent=11 // pred_fallthru
          _
        // Predicated region
        $region25: #{embedding_fwd.1} parent=11 // pred_check
          %p377 = pneg %p159
        $region26: #{embedding_fwd.1} parent=11 // pred_check_branch
          %379 = sbr.rel (%p377) target = $region28
        $region27: #{embedding_fwd.1} parent=11 // pred_region
          _
        $region28: #{embedding_fwd.1} parent=11 // pred_fallthru
          _
        // Predicated region
        $region29: #{embedding_fwd.1} parent=11 // pred_check
          %p380 = pneg %p180
        $region30: #{embedding_fwd.1} parent=11 // pred_check_branch
          %382 = sbr.rel (%p380) target = $region32
        $region31: #{embedding_fwd.1} parent=11 // pred_region
          _
        $region32: #{embedding_fwd.1} parent=11 // pred_fallthru
          _
        // Predicated region
        $region33: #{embedding_fwd.1} parent=11 // pred_check
          %p383 = pneg %p201
        $region34: #{embedding_fwd.1} parent=11 // pred_check_branch
          %385 = sbr.rel (%p383) target = $region36
        $region35: #{embedding_fwd.1} parent=11 // pred_region
          _
        $region36: #{embedding_fwd.1} parent=11 // pred_fallthru
          _
        // Predicated region
        $region37: #{embedding_fwd.1} parent=11 // pred_check
          %p386 = pneg %p222
        $region38: #{embedding_fwd.1} parent=11 // pred_check_branch
          %388 = sbr.rel (%p386) target = $region40
        $region39: #{embedding_fwd.1} parent=11 // pred_region
          _
        $region40: #{embedding_fwd.1} parent=11 // pred_fallthru
          _
        // Predicated region
        $region41: #{embedding_fwd.1} parent=11 // pred_check
          %p389 = pneg %p243
        $region42: #{embedding_fwd.1} parent=11 // pred_check_branch
          %391 = sbr.rel (%p389) target = $region44
        $region43: #{embedding_fwd.1} parent=11 // pred_region
          _
        $region44: #{embedding_fwd.1} parent=11 // pred_fallthru
          _
        // Predicated region
        $region45: #{embedding_fwd.1} parent=11 // pred_check
          %p392 = pneg %p264
        $region46: #{embedding_fwd.1} parent=11 // pred_check_branch
          %394 = sbr.rel (%p392) target = $region48
        $region47: #{embedding_fwd.1} parent=11 // pred_region
          _
        $region48: #{embedding_fwd.1} parent=11 // pred_fallthru
          _
        // Predicated region
        $region49: #{embedding_fwd.1} parent=11 // pred_check
          %p395 = pneg %p285
        $region50: #{embedding_fwd.1} parent=11 // pred_check_branch
          %397 = sbr.rel (%p395) target = $region52
        $region51: #{embedding_fwd.1} parent=11 // pred_region
          _
        $region52: #{embedding_fwd.1} parent=11 // pred_fallthru
          _
        // Predicated region
        $region53: #{embedding_fwd.1} parent=11 // pred_check
          %p398 = pneg %p306
        $region54: #{embedding_fwd.1} parent=11 // pred_check_branch
          %400 = sbr.rel (%p398) target = $region56
        $region55: #{embedding_fwd.1} parent=11 // pred_region
          _
        $region56: #{embedding_fwd.1} parent=11 // pred_fallthru
          _
        // Predicated region
        $region57: #{embedding_fwd.1} parent=11 // pred_check
          %p401 = pneg %p327
        $region58: #{embedding_fwd.1} parent=11 // pred_check_branch
          %403 = sbr.rel (%p401) target = $region60
        $region59: #{embedding_fwd.1} parent=11 // pred_region
          _
        $region60: #{embedding_fwd.1} parent=11 // pred_fallthru
          _
      $region12: #{embedding_fwd.1} parent=5 // pred_fallthru
        _
      %p404 = scmp.lt.s32.totalorder %s23, 4
      // Predicated region
      $region61: #{embedding_fwd.1} parent=5 // pred_check
        %p405 = pneg %p404
      $region62: #{embedding_fwd.1} parent=5 // pred_check_branch
        %407 = sbr.rel (%p405) target = $region64
      $region63: #{embedding_fwd.1} parent=5 // pred_region
        // Predicated region
        $region65: #{embedding_fwd.1} parent=63 // pred_check
          %p408 = pneg %p43
        $region66: #{embedding_fwd.1} parent=63 // pred_check_branch
          %410 = sbr.rel (%p408) target = $region68
        $region67: #{embedding_fwd.1} parent=63 // pred_region
          %s411 = sand.u32 %s33, 1
          %s412 = sand.u32 %s33, 1
          %s413 = smul.addr %s412, 16
          %s414 = scalar_lea.vmem [#allocation2], %s413
          %s415 = smul.addr %s23, 4
          %s416 = scalar_lea.vmem %s0, %s415
          // Predicated region
          $region69: #{embedding_fwd.1} parent=67 // pred_check
            _
          $region70: #{embedding_fwd.1} parent=67 // pred_check_branch
            %418 = sbr.rel (0) target = $region72
          $region71: #{embedding_fwd.1} parent=67 // pred_region
            // Predicated region
            $region73: #{embedding_fwd.1} parent=71 // pred_check
              _
            $region74: #{embedding_fwd.1} parent=71 // pred_check_branch
              %420 = sbr.rel target = $region76
            $region75: #{embedding_fwd.1} parent=71 // pred_region
              // Predicated region
              $region88: #{embedding_fwd.1} parent=75 // pred_check
                _
              $region89: #{embedding_fwd.1} parent=75 // pred_check_branch
                %441 = sbr.rel (0) target = $region91
              $region90: #{embedding_fwd.1} parent=75 // pred_region
                loop: start=0, step=1, limit=1
                $region92: #{embedding_fwd.1} parent=90 // loop_pre_header
                  _
                $region93: #{embedding_fwd.1} parent=90 // loop_header
                  %s443 = sphi 0, %s447
                  %p444 = scmp.ge.s32.totalorder %s443, 1
                  %s448 = sphi %s416, %s416
                  %s449 = sphi %s414, %s414
                $region94: #{embedding_fwd.1} parent=90 // loop_header_branch
                  %446 = sbr.rel (%p444) target = $region98
                $region95: #{embedding_fwd.1} parent=90 // loop_body
                  _
                $region96: #{embedding_fwd.1} parent=90 // loop_footer
                  %s447 = sadd.s32 1, %s443
                $region97: #{embedding_fwd.1} parent=90 // loop_footer_branch
                  %442 = sbr.rel target = $region93
                $region98: #{embedding_fwd.1} parent=90 // loop_exit
                  _
                loop: start=0, step=1, limit=1
                $region99: #{embedding_fwd.1} parent=90 // loop_pre_header
                  _
                $region100: #{embedding_fwd.1} parent=90 // loop_header
                  %s452 = sphi 0, %s456
                  %p453 = scmp.ge.s32.totalorder %s452, 1
                  %s457 = sphi %s416, %s416
                  %s458 = sphi %s414, %s414
                $region101: #{embedding_fwd.1} parent=90 // loop_header_branch
                  %455 = sbr.rel (%p453) target = $region105
                $region102: #{embedding_fwd.1} parent=90 // loop_body
                  %v459 = vld [vmem:[%s457] sm:$0xf]
                  %460 = vst [vmem:[%s458] sm:$0xf] %v459
                  %v461 = vld [vmem:[%s457 + $0x10] sm:$0xf]
                  %462 = vst [vmem:[%s458 + $0x4] sm:$0xf] %v461
                  %v463 = vld [vmem:[%s457 + $0x20] sm:$0xf]
                  %464 = vst [vmem:[%s458 + $0x8] sm:$0xf] %v463
                  %v465 = vld [vmem:[%s457 + $0x30] sm:$0xf]
                  %466 = vst [vmem:[%s458 + $0xc] sm:$0xf] %v465
                $region103: #{embedding_fwd.1} parent=90 // loop_footer
                  %s456 = sadd.s32 1, %s452
                $region104: #{embedding_fwd.1} parent=90 // loop_footer_branch
                  %451 = sbr.rel target = $region100
                $region105: #{embedding_fwd.1} parent=90 // loop_exit
                  _
              $region91: #{embedding_fwd.1} parent=75 // pred_fallthru
                _
            $region76: #{embedding_fwd.1} parent=71 // pred_fallthru
              _
            // Predicated region
            $region77: #{embedding_fwd.1} parent=71 // pred_check
              _
            $region78: #{embedding_fwd.1} parent=71 // pred_check_branch
              %422 = sbr.rel (0) target = $region80
            $region79: #{embedding_fwd.1} parent=71 // pred_region
              loop: start=0, step=1, limit=1
              $region81: #{embedding_fwd.1} parent=79 // loop_pre_header
                _
              $region82: #{embedding_fwd.1} parent=79 // loop_header
                %s425 = sphi 0, %s429
                %p426 = scmp.ge.s32.totalorder %s425, 1
                %s430 = sphi %s416, %s416
                %s431 = sphi %s414, %s414
              $region83: #{embedding_fwd.1} parent=79 // loop_header_branch
                %428 = sbr.rel (%p426) target = $region87
              $region84: #{embedding_fwd.1} parent=79 // loop_body
                %v432 = vld [vmem:[%s430] sm:$0xf]
                %433 = vst [vmem:[%s431] sm:$0xf] %v432
                %v434 = vld [vmem:[%s430 + $0x10] sm:$0xf]
                %435 = vst [vmem:[%s431 + $0x4] sm:$0xf] %v434
                %v436 = vld [vmem:[%s430 + $0x20] sm:$0xf]
                %437 = vst [vmem:[%s431 + $0x8] sm:$0xf] %v436
                %v438 = vld [vmem:[%s430 + $0x30] sm:$0xf]
                %439 = vst [vmem:[%s431 + $0xc] sm:$0xf] %v438
              $region85: #{embedding_fwd.1} parent=79 // loop_footer
                %s429 = sadd.s32 1, %s425
              $region86: #{embedding_fwd.1} parent=79 // loop_footer_branch
                %424 = sbr.rel target = $region82
              $region87: #{embedding_fwd.1} parent=79 // loop_exit
                _
            $region80: #{embedding_fwd.1} parent=71 // pred_fallthru
              _
          $region72: #{embedding_fwd.1} parent=67 // pred_fallthru
            _
          %467 = vnop
        $region68: #{embedding_fwd.1} parent=63 // pred_fallthru
          _
        // Predicated region
        $region106: #{embedding_fwd.1} parent=63 // pred_check
          %p468 = pneg %p69
        $region107: #{embedding_fwd.1} parent=63 // pred_check_branch
          %470 = sbr.rel (%p468) target = $region109
        $region108: #{embedding_fwd.1} parent=63 // pred_region
          %p471 = scmp.lt.s32.totalorder %s23, 3
          %s472 = scalar_select %p471, %s23, 3
          %s473 = smul.addr %s472, 4
          %s474 = scalar_lea.vmem %s1, %s473
        $region109: #{embedding_fwd.1} parent=63 // pred_fallthru
          _
      $region64: #{embedding_fwd.1} parent=5 // pred_fallthru
        _
      %p475 = scmp.le.s32.totalorder 1, %s23
      %p476 = scmp.lt.s32.totalorder %s23, 5
      %p477 = pnand %p475, %p476
      %p478 = pneg %p477
      // Predicated region
      $region110: #{embedding_fwd.1} parent=5 // pred_check
        _
      $region111: #{embedding_fwd.1} parent=5 // pred_check_branch
        %480 = sbr.rel (%p477) target = $region113
      $region112: #{embedding_fwd.1} parent=5 // pred_region
        %s481 = ssub.s32 %s23, 1
        %s482 = sand.u32 %s36, 1
        %s483 = sand.u32 %s36, 1
        %s484 = smul.addr %s483, 16
        %s485 = scalar_lea.vmem [#allocation2], %s484
        // Predicated region
        $region114: #{embedding_fwd.1} parent=112 // pred_check
          %p486 = pneg %p49
        $region115: #{embedding_fwd.1} parent=112 // pred_check_branch
          %488 = sbr.rel (%p486) target = $region117
        $region116: #{embedding_fwd.1} parent=112 // pred_region
          _
        $region117: #{embedding_fwd.1} parent=112 // pred_fallthru
          _
        %s489 = sand.u32 %s36, 1
        %s490 = sand.u32 %s36, 1
        %s491 = smul.addr %s490, 16
        %s492 = scalar_lea.vmem [#allocation2], %s491
        %p493 = pneg %p49
        %p494 = pneg %p46
        %p495 = scmp.lt.s32.totalorder %s28, 3
        %s496 = scalar_select %p495, %s28, 3
        %s497 = smul.addr %s496, 4
        %s498 = scalar_lea.vmem %s1, %s497
        %p499 = pneg %p75
        %p500 = pneg %p72
        %p501 = pneg %p96
        %p502 = pneg %p93
        %p503 = pneg %p117
        %p504 = pneg %p114
        %p505 = pneg %p138
        %p506 = pneg %p135
        %p507 = pneg %p159
        %p508 = pneg %p156
        %p509 = pneg %p180
        %p510 = pneg %p177
        %p511 = pneg %p201
        %p512 = pneg %p198
        %p513 = pneg %p222
        %p514 = pneg %p219
        %p515 = pneg %p243
        %p516 = pneg %p240
        %p517 = pneg %p264
        %p518 = pneg %p261
        %p519 = pneg %p285
        %p520 = pneg %p282
        %p521 = pneg %p306
        %p522 = pneg %p303
        %p523 = pneg %p327
        %p524 = pneg %p324
        %p525 = pneg %p353
        %p526 = pneg %p350
        %s527 = sand.u32 %s340, 1
        %s528 = scalar_lea.sflag [#allocation4], %s527
        %s529 = sand.u32 %s340, 1
        %s530 = smul.addr %s529, 4
        %s531 = scalar_lea.vmem [#allocation3], %s530
        %p532 = scmp.lt.s32.totalorder %s28, 3
        %s533 = scalar_select %p532, %s28, 3
        %s534 = smul.addr %s533, 4
        %s535 = scalar_lea.vmem %s1, %s534
        %v537 = vld [vmem:[%s3] sm:$0x1]
        %v538 = vld [vmem:[%s485] sm:$0xf]
        %v539 = vld [vmem:[%s2] sm:$0xf]
        %v540 = vld [vmem:[%s2 + $0x4] sm:$0xf]
        %v541 = vld [vmem:[%s2 + $0x8] sm:$0xf]
        %v542 = vld [vmem:[%s2 + $0xc] sm:$0xf]
        %v543 = vld [vmem:[%s2 + $0x10] sm:$0xf]
        %v545 = vlaneseq
        %v546 = vshrl.u32 %v545, 7
        %v547 = vsub.s32 0, %v546
        %v548 = vrot.slane %v537, %v547
        %v555 = vunpack.c.l.b16 %v539
        %v556 = vunpack.c.l.b16 %v540
        %v557 = vunpack.c.l.b16 %v541
        %v558 = vunpack.c.l.b16 %v542
        %v559 = vunpack.c.l.b16 %v543
        %v560 = vpack.c.b16 %v556, %v555
        %v561 = vpack.c.b16 %v558, %v557
        %v562 = vpack.c.b16 %v559, %v559
        %vm565 = vcmask 326656
        %v567 = vsel %vm565, %v538, 0
        %vm569 = vcmask 1043456
        %v571 = vsel %vm569, %v562, 0
        %573 = vmatprep.subr.bf16.mxu0 0
        %574 = vmatpush1.bf16.msra.mxu0 %v560
        %575 = vmatprep.subr.bf16.mxu0 0
        %576 = vmatpush1.bf16.msra.mxu0 %v561
        %577 = vmatprep.subr.bf16.mxu0 0
        %578 = vmatpush1.bf16.msra.mxu0 %v571
        %579 = vmatprep.subr.bf16.mxu0 0
        %580 = vmatpush1.bf16.msra.mxu0 0
        %581 = vmatprep.subr.bf16.mxu0 0
        %582 = vmatpush1.bf16.msra.mxu0 0
        %583 = vmatprep.subr.bf16.mxu0 0
        %584 = vmatpush1.bf16.msra.mxu0 0
        %585 = vmatprep.subr.bf16.mxu0 0
        %586 = vmatpush1.bf16.msra.mxu0 0
        %587 = vmatprep.subr.bf16.mxu0 0
        %588 = vmatpush1.bf16.msra.mxu0 0
        %589 = vmatprep.subr.bf16.mxu0 0
        %590 = vmatpush1.bf16.msra.mxu0 0
        %591 = vmatprep.subr.bf16.mxu0 0
        %592 = vmatpush1.bf16.msra.mxu0 0
        %593 = vmatprep.subr.bf16.mxu0 0
        %594 = vmatpush1.bf16.msra.mxu0 0
        %595 = vmatprep.subr.bf16.mxu0 0
        %596 = vmatpush1.bf16.msra.mxu0 0
        %597 = vmatprep.subr.bf16.mxu0 0
        %598 = vmatpush1.bf16.msra.mxu0 0
        %599 = vmatprep.subr.bf16.mxu0 0
        %600 = vmatpush1.bf16.msra.mxu0 0
        %601 = vmatprep.subr.bf16.mxu0 0
        %602 = vmatpush1.bf16.msra.mxu0 0
        %603 = vmatprep.subr.bf16.mxu0 0
        %604 = vmatpush1.bf16.msra.mxu0 0
        %605 = vmatprep.mubr.bf16.mxu0 0
        %606 = vmatmul.mubr.bf16.gmra.mrb[0].mxu0 %v567
        %v607 = vpop.f32.mrb[0].mxu0
        %v608 = vadd.f32 %v548, %v607
        %v609 = vpop.f32.mrb[0].mxu0
        %v610 = vpop.f32.mrb[0].mxu0
        %v611 = vpop.f32.mrb[0].mxu0
        %612 = vdwg.mxu0
        %v613 = vmax.f32 %v608, 0.0
        %s614 = scalar_lea.vmem %s485, 4 [#allocation2]
        %v615 = vld [vmem:[%s614] sm:$0xf]
        %v617 = vsel %vm565, %v615, 0
        %619 = vmatprep.subr.bf16.mxu0 0
        %620 = vmatpush1.bf16.msra.mxu0 %v560
        %621 = vmatprep.subr.bf16.mxu0 0
        %622 = vmatpush1.bf16.msra.mxu0 %v561
        %623 = vmatprep.subr.bf16.mxu0 0
        %624 = vmatpush1.bf16.msra.mxu0 %v571
        %625 = vmatprep.subr.bf16.mxu0 0
        %626 = vmatpush1.bf16.msra.mxu0 0
        %627 = vmatprep.subr.bf16.mxu0 0
        %628 = vmatpush1.bf16.msra.mxu0 0
        %629 = vmatprep.subr.bf16.mxu0 0
        %630 = vmatpush1.bf16.msra.mxu0 0
        %631 = vmatprep.subr.bf16.mxu0 0
        %632 = vmatpush1.bf16.msra.mxu0 0
        %633 = vmatprep.subr.bf16.mxu0 0
        %634 = vmatpush1.bf16.msra.mxu0 0
        %635 = vmatprep.subr.bf16.mxu0 0
        %636 = vmatpush1.bf16.msra.mxu0 0
        %637 = vmatprep.subr.bf16.mxu0 0
        %638 = vmatpush1.bf16.msra.mxu0 0
        %639 = vmatprep.subr.bf16.mxu0 0
        %640 = vmatpush1.bf16.msra.mxu0 0
        %641 = vmatprep.subr.bf16.mxu0 0
        %642 = vmatpush1.bf16.msra.mxu0 0
        %643 = vmatprep.subr.bf16.mxu0 0
        %644 = vmatpush1.bf16.msra.mxu0 0
        %645 = vmatprep.subr.bf16.mxu0 0
        %646 = vmatpush1.bf16.msra.mxu0 0
        %647 = vmatprep.subr.bf16.mxu0 0
        %648 = vmatpush1.bf16.msra.mxu0 0
        %649 = vmatprep.subr.bf16.mxu0 0
        %650 = vmatpush1.bf16.msra.mxu0 0
        %651 = vmatprep.mubr.bf16.mxu0 0
        %652 = vmatmul.mubr.bf16.gmra.mrb[0].mxu0 %v617
        %v653 = vpop.f32.mrb[0].mxu0
        %v654 = vadd.f32 %v548, %v653
        %v655 = vpop.f32.mrb[0].mxu0
        %v656 = vpop.f32.mrb[0].mxu0
        %v657 = vpop.f32.mrb[0].mxu0
        %658 = vdwg.mxu0
        %v659 = vmax.f32 %v654, 0.0
        %v660 = vmax.f32 %v613, %v659
        %s661 = scalar_lea.vmem %s485, 8 [#allocation2]
        %v662 = vld [vmem:[%s661] sm:$0xf]
        %v664 = vsel %vm565, %v662, 0
        %666 = vmatprep.subr.bf16.mxu0 0
        %667 = vmatpush1.bf16.msra.mxu0 %v560
        %668 = vmatprep.subr.bf16.mxu0 0
        %669 = vmatpush1.bf16.msra.mxu0 %v561
        %670 = vmatprep.subr.bf16.mxu0 0
        %671 = vmatpush1.bf16.msra.mxu0 %v571
        %672 = vmatprep.subr.bf16.mxu0 0
        %673 = vmatpush1.bf16.msra.mxu0 0
        %674 = vmatprep.subr.bf16.mxu0 0
        %675 = vmatpush1.bf16.msra.mxu0 0
        %676 = vmatprep.subr.bf16.mxu0 0
        %677 = vmatpush1.bf16.msra.mxu0 0
        %678 = vmatprep.subr.bf16.mxu0 0
        %679 = vmatpush1.bf16.msra.mxu0 0
        %680 = vmatprep.subr.bf16.mxu0 0
        %681 = vmatpush1.bf16.msra.mxu0 0
        %682 = vmatprep.subr.bf16.mxu0 0
        %683 = vmatpush1.bf16.msra.mxu0 0
        %684 = vmatprep.subr.bf16.mxu0 0
        %685 = vmatpush1.bf16.msra.mxu0 0
        %686 = vmatprep.subr.bf16.mxu0 0
        %687 = vmatpush1.bf16.msra.mxu0 0
        %688 = vmatprep.subr.bf16.mxu0 0
        %689 = vmatpush1.bf16.msra.mxu0 0
        %690 = vmatprep.subr.bf16.mxu0 0
        %691 = vmatpush1.bf16.msra.mxu0 0
        %692 = vmatprep.subr.bf16.mxu0 0
        %693 = vmatpush1.bf16.msra.mxu0 0
        %694 = vmatprep.subr.bf16.mxu0 0
        %695 = vmatpush1.bf16.msra.mxu0 0
        %696 = vmatprep.subr.bf16.mxu0 0
        %697 = vmatpush1.bf16.msra.mxu0 0
        %698 = vmatprep.mubr.bf16.mxu0 0
        %699 = vmatmul.mubr.bf16.gmra.mrb[0].mxu0 %v664
        %v700 = vpop.f32.mrb[0].mxu0
        %v701 = vadd.f32 %v548, %v700
        %v702 = vpop.f32.mrb[0].mxu0
        %v703 = vpop.f32.mrb[0].mxu0
        %v704 = vpop.f32.mrb[0].mxu0
        %705 = vdwg.mxu0
        %v706 = vmax.f32 %v701, 0.0
        %v707 = vmax.f32 %v660, %v706
        %s708 = scalar_lea.vmem %s485, 12 [#allocation2]
        %v709 = vld [vmem:[%s708] sm:$0xf]
        %v711 = vsel %vm565, %v709, 0
        %713 = vmatprep.subr.bf16.mxu0 0
        %714 = vmatpush1.bf16.msra.mxu0 %v560
        %715 = vmatprep.subr.bf16.mxu0 0
        %716 = vmatpush1.bf16.msra.mxu0 %v561
        %717 = vmatprep.subr.bf16.mxu0 0
        %718 = vmatpush1.bf16.msra.mxu0 %v571
        %719 = vmatprep.subr.bf16.mxu0 0
        %720 = vmatpush1.bf16.msra.mxu0 0
        %721 = vmatprep.subr.bf16.mxu0 0
        %722 = vmatpush1.bf16.msra.mxu0 0
        %723 = vmatprep.subr.bf16.mxu0 0
        %724 = vmatpush1.bf16.msra.mxu0 0
        %725 = vmatprep.subr.bf16.mxu0 0
        %726 = vmatpush1.bf16.msra.mxu0 0
        %727 = vmatprep.subr.bf16.mxu0 0
        %728 = vmatpush1.bf16.msra.mxu0 0
        %729 = vmatprep.subr.bf16.mxu0 0
        %730 = vmatpush1.bf16.msra.mxu0 0
        %731 = vmatprep.subr.bf16.mxu0 0
        %732 = vmatpush1.bf16.msra.mxu0 0
        %733 = vmatprep.subr.bf16.mxu0 0
        %734 = vmatpush1.bf16.msra.mxu0 0
        %735 = vmatprep.subr.bf16.mxu0 0
        %736 = vmatpush1.bf16.msra.mxu0 0
        %737 = vmatprep.subr.bf16.mxu0 0
        %738 = vmatpush1.bf16.msra.mxu0 0
        %739 = vmatprep.subr.bf16.mxu0 0
        %740 = vmatpush1.bf16.msra.mxu0 0
        %741 = vmatprep.subr.bf16.mxu0 0
        %742 = vmatpush1.bf16.msra.mxu0 0
        %743 = vmatprep.subr.bf16.mxu0 0
        %744 = vmatpush1.bf16.msra.mxu0 0
        %745 = vmatprep.mubr.bf16.mxu0 0
        %746 = vmatmul.mubr.bf16.gmra.mrb[0].mxu0 %v711
        %v747 = vpop.f32.mrb[0].mxu0
        %v748 = vadd.f32 %v548, %v747
        %v749 = vpop.f32.mrb[0].mxu0
        %v750 = vpop.f32.mrb[0].mxu0
        %v751 = vpop.f32.mrb[0].mxu0
        %752 = vdwg.mxu0
        %v753 = vmax.f32 %v748, 0.0
        %v754 = vmax.f32 %v707, %v753
        %v755 = vpack.c.bf16 %v754, %v754
        %v756 = vld [vmem:[%s4] sm:$0xf]
        %v757 = vld [vmem:[%s4 + $0x4] sm:$0xf]
        %v758 = vld [vmem:[%s4 + $0x8] sm:$0xf]
        %v759 = vld [vmem:[%s4 + $0xc] sm:$0xf]
        %v760 = vld [vmem:[%s535] sm:$0xf]
        %v761 = vld [vmem:[%s5] sm:$0xf]
        %v762 = vld [vmem:[%s5 + $0x4] sm:$0xf]
        %v765 = vunpack.c.l.b16 %v761
        %v766 = vunpack.c.l.b16 %v762
        %v767 = vpack.c.b16 %v766, %v765
        %vm769 = vcmask 130048
        %v771 = vsel %vm769, %v760, 0
        %773 = vmatprep.subr.bf16.mxu0 0
        %774 = vmatpush1.bf16.msra.mxu0 %v767
        %775 = vmatprep.subr.bf16.mxu0 0
        %776 = vmatpush1.bf16.msra.mxu0 0
        %777 = vmatprep.subr.bf16.mxu0 0
        %778 = vmatpush1.bf16.msra.mxu0 0
        %779 = vmatprep.subr.bf16.mxu0 0
        %780 = vmatpush1.bf16.msra.mxu0 0
        %781 = vmatprep.subr.bf16.mxu0 0
        %782 = vmatpush1.bf16.msra.mxu0 0
        %783 = vmatprep.subr.bf16.mxu0 0
        %784 = vmatpush1.bf16.msra.mxu0 0
        %785 = vmatprep.subr.bf16.mxu0 0
        %786 = vmatpush1.bf16.msra.mxu0 0
        %787 = vmatprep.subr.bf16.mxu0 0
        %788 = vmatpush1.bf16.msra.mxu0 0
        %789 = vmatprep.subr.bf16.mxu0 0
        %790 = vmatpush1.bf16.msra.mxu0 0
        %791 = vmatprep.subr.bf16.mxu0 0
        %792 = vmatpush1.bf16.msra.mxu0 0
        %793 = vmatprep.subr.bf16.mxu0 0
        %794 = vmatpush1.bf16.msra.mxu0 0
        %795 = vmatprep.subr.bf16.mxu0 0
        %796 = vmatpush1.bf16.msra.mxu0 0
        %797 = vmatprep.subr.bf16.mxu0 0
        %798 = vmatpush1.bf16.msra.mxu0 0
        %799 = vmatprep.subr.bf16.mxu0 0
        %800 = vmatpush1.bf16.msra.mxu0 0
        %801 = vmatprep.subr.bf16.mxu0 0
        %802 = vmatpush1.bf16.msra.mxu0 0
        %803 = vmatprep.subr.bf16.mxu0 0
        %804 = vmatpush1.bf16.msra.mxu0 0
        %805 = vmatprep.mubr.bf16.mxu0 0
        %806 = vmatmul.mubr.bf16.gmra.mrb[0].mxu0 %v771
        %v807 = vpop.f32.mrb[0].mxu0
        %v808 = vadd.f32 0.0, %v807
        %v809 = vpop.f32.mrb[0].mxu0
        %v810 = vpop.f32.mrb[0].mxu0
        %v811 = vpop.f32.mrb[0].mxu0
        %812 = vdwg.mxu0
        %v817 = vunpack.c.l.b16 %v756
        %v818 = vunpack.c.l.b16 %v757
        %v819 = vunpack.c.l.b16 %v758
        %v820 = vunpack.c.l.b16 %v759
        %v821 = vpack.c.b16 %v818, %v817
        %v822 = vpack.c.b16 %v820, %v819
        %vm825 = vcmask 261120
        %v827 = vsel %vm825, %v755, 0
        %829 = vmatprep.subr.bf16.mxu0 0
        %830 = vmatpush1.bf16.msra.mxu0 %v821
        %831 = vmatprep.subr.bf16.mxu0 0
        %832 = vmatpush1.bf16.msra.mxu0 %v822
        %833 = vmatprep.subr.bf16.mxu0 0
        %834 = vmatpush1.bf16.msra.mxu0 0
        %835 = vmatprep.subr.bf16.mxu0 0
        %836 = vmatpush1.bf16.msra.mxu0 0
        %837 = vmatprep.subr.bf16.mxu0 0
        %838 = vmatpush1.bf16.msra.mxu0 0
        %839 = vmatprep.subr.bf16.mxu0 0
        %840 = vmatpush1.bf16.msra.mxu0 0
        %841 = vmatprep.subr.bf16.mxu0 0
        %842 = vmatpush1.bf16.msra.mxu0 0
        %843 = vmatprep.subr.bf16.mxu0 0
        %844 = vmatpush1.bf16.msra.mxu0 0
        %845 = vmatprep.subr.bf16.mxu0 0
        %846 = vmatpush1.bf16.msra.mxu0 0
        %847 = vmatprep.subr.bf16.mxu0 0
        %848 = vmatpush1.bf16.msra.mxu0 0
        %849 = vmatprep.subr.bf16.mxu0 0
        %850 = vmatpush1.bf16.msra.mxu0 0
        %851 = vmatprep.subr.bf16.mxu0 0
        %852 = vmatpush1.bf16.msra.mxu0 0
        %853 = vmatprep.subr.bf16.mxu0 0
        %854 = vmatpush1.bf16.msra.mxu0 0
        %855 = vmatprep.subr.bf16.mxu0 0
        %856 = vmatpush1.bf16.msra.mxu0 0
        %857 = vmatprep.subr.bf16.mxu0 0
        %858 = vmatpush1.bf16.msra.mxu0 0
        %859 = vmatprep.subr.bf16.mxu0 0
        %860 = vmatpush1.bf16.msra.mxu0 0
        %861 = vmatprep.mubr.bf16.mxu0 0
        %862 = vmatmul.mubr.bf16.gmra.mrb[0].mxu0 %v827
        %v863 = vpop.f32.mrb[0].mxu0
        %v864 = vadd.f32 %v808, %v863
        %v865 = vpop.f32.mrb[0].mxu0
        %v866 = vpop.f32.mrb[0].mxu0
        %v867 = vpop.f32.mrb[0].mxu0
        %868 = vdwg.mxu0
        %v869 = vpack.c.bf16 %v864, %v864
        %v870 = vld [vmem:[%s8] sm:$0xf]
        %v871 = vld [vmem:[%s8 + $0x4] sm:$0xf]
        %v872 = vld [vmem:[%s8 + $0x8] sm:$0xf]
        %v873 = vld [vmem:[%s8 + $0xc] sm:$0xf]
        %v874 = vld [vmem:[%s9] sm:$0x1]
        %v876 = vlaneseq
        %v877 = vshrl.u32 %v876, 7
        %v878 = vsub.s32 0, %v877
        %v879 = vrot.slane %v874, %v878
        %v885 = vunpack.c.l.b16 %v870
        %v886 = vunpack.c.l.b16 %v871
        %v887 = vunpack.c.l.b16 %v872
        %v888 = vunpack.c.l.b16 %v873
        %v889 = vpack.c.b16 %v886, %v885
        %v890 = vpack.c.b16 %v888, %v887
        %v894 = vsel %vm825, %v869, 0
        %896 = vmatprep.subr.bf16.mxu0 0
        %897 = vmatpush1.bf16.msra.mxu0 %v889
        %898 = vmatprep.subr.bf16.mxu0 0
        %899 = vmatpush1.bf16.msra.mxu0 %v890
        %900 = vmatprep.subr.bf16.mxu0 0
        %901 = vmatpush1.bf16.msra.mxu0 0
        %902 = vmatprep.subr.bf16.mxu0 0
        %903 = vmatpush1.bf16.msra.mxu0 0
        %904 = vmatprep.subr.bf16.mxu0 0
        %905 = vmatpush1.bf16.msra.mxu0 0
        %906 = vmatprep.subr.bf16.mxu0 0
        %907 = vmatpush1.bf16.msra.mxu0 0
        %908 = vmatprep.subr.bf16.mxu0 0
        %909 = vmatpush1.bf16.msra.mxu0 0
        %910 = vmatprep.subr.bf16.mxu0 0
        %911 = vmatpush1.bf16.msra.mxu0 0
        %912 = vmatprep.subr.bf16.mxu0 0
        %913 = vmatpush1.bf16.msra.mxu0 0
        %914 = vmatprep.subr.bf16.mxu0 0
        %915 = vmatpush1.bf16.msra.mxu0 0
        %916 = vmatprep.subr.bf16.mxu0 0
        %917 = vmatpush1.bf16.msra.mxu0 0
        %918 = vmatprep.subr.bf16.mxu0 0
        %919 = vmatpush1.bf16.msra.mxu0 0
        %920 = vmatprep.subr.bf16.mxu0 0
        %921 = vmatpush1.bf16.msra.mxu0 0
        %922 = vmatprep.subr.bf16.mxu0 0
        %923 = vmatpush1.bf16.msra.mxu0 0
        %924 = vmatprep.subr.bf16.mxu0 0
        %925 = vmatpush1.bf16.msra.mxu0 0
        %926 = vmatprep.subr.bf16.mxu0 0
        %927 = vmatpush1.bf16.msra.mxu0 0
        %928 = vmatprep.mubr.bf16.mxu0 0
        %929 = vmatmul.mubr.bf16.gmra.mrb[0].mxu0 %v894
        %v930 = vpop.f32.mrb[0].mxu0
        %v931 = vadd.f32 %v879, %v930
        %v932 = vpop.f32.mrb[0].mxu0
        %v933 = vpop.f32.mrb[0].mxu0
        %v934 = vpop.f32.mrb[0].mxu0
        %935 = vdwg.mxu0
        %v936 = vsub.f32 0.0, %v931
        %v937 = vmul.f32 %v936, 1.442695
        %v938 = vpow.pop %v937
        %v939 = vadd.f32 %v938, 1.0
        %v940 = vrcp.pop %v939
        %v941 = vmul.f32 1.0, %v940
        %v942 = vld [vmem:[%s6] sm:$0xf]
        %v943 = vld [vmem:[%s6 + $0x4] sm:$0xf]
        %v944 = vld [vmem:[%s6 + $0x8] sm:$0xf]
        %v945 = vld [vmem:[%s6 + $0xc] sm:$0xf]
        %v946 = vld [vmem:[%s7] sm:$0x1]
        %v948 = vlaneseq
        %v949 = vshrl.u32 %v948, 7
        %v950 = vsub.s32 0, %v949
        %v951 = vrot.slane %v946, %v950
        %v957 = vunpack.c.l.b16 %v942
        %v958 = vunpack.c.l.b16 %v943
        %v959 = vunpack.c.l.b16 %v944
        %v960 = vunpack.c.l.b16 %v945
        %v961 = vpack.c.b16 %v958, %v957
        %v962 = vpack.c.b16 %v960, %v959
        %965 = vmatprep.subr.bf16.mxu0 0
        %966 = vmatpush1.bf16.msra.mxu0 %v961
        %967 = vmatprep.subr.bf16.mxu0 0
        %968 = vmatpush1.bf16.msra.mxu0 %v962
        %969 = vmatprep.subr.bf16.mxu0 0
        %970 = vmatpush1.bf16.msra.mxu0 0
        %971 = vmatprep.subr.bf16.mxu0 0
        %972 = vmatpush1.bf16.msra.mxu0 0
        %973 = vmatprep.subr.bf16.mxu0 0
        %974 = vmatpush1.bf16.msra.mxu0 0
        %975 = vmatprep.subr.bf16.mxu0 0
        %976 = vmatpush1.bf16.msra.mxu0 0
        %977 = vmatprep.subr.bf16.mxu0 0
        %978 = vmatpush1.bf16.msra.mxu0 0
        %979 = vmatprep.subr.bf16.mxu0 0
        %980 = vmatpush1.bf16.msra.mxu0 0
        %981 = vmatprep.subr.bf16.mxu0 0
        %982 = vmatpush1.bf16.msra.mxu0 0
        %983 = vmatprep.subr.bf16.mxu0 0
        %984 = vmatpush1.bf16.msra.mxu0 0
        %985 = vmatprep.subr.bf16.mxu0 0
        %986 = vmatpush1.bf16.msra.mxu0 0
        %987 = vmatprep.subr.bf16.mxu0 0
        %988 = vmatpush1.bf16.msra.mxu0 0
        %989 = vmatprep.subr.bf16.mxu0 0
        %990 = vmatpush1.bf16.msra.mxu0 0
        %991 = vmatprep.subr.bf16.mxu0 0
        %992 = vmatpush1.bf16.msra.mxu0 0
        %993 = vmatprep.subr.bf16.mxu0 0
        %994 = vmatpush1.bf16.msra.mxu0 0
        %995 = vmatprep.subr.bf16.mxu0 0
        %996 = vmatpush1.bf16.msra.mxu0 0
        %997 = vmatprep.mubr.bf16.mxu0 0
        %998 = vmatmul.mubr.bf16.gmra.mrb[0].mxu0 %v894
        %v999 = vpop.f32.mrb[0].mxu0
        %v1000 = vadd.f32 %v951, %v999
        %v1001 = vpop.f32.mrb[0].mxu0
        %v1002 = vpop.f32.mrb[0].mxu0
        %v1003 = vpop.f32.mrb[0].mxu0
        %1004 = vdwg.mxu0
        %v1005 = vmax.f32 %v1000, 0.0
        %v1006 = vmul.f32 %v941, %v1005
        %v1007 = vsub.f32 1.0, %v941
        %v1008 = vmul.f32 %v1007, %v864
        %v1009 = vadd.f32 %v1006, %v1008
        %v1010 = vpack.c.bf16 %v1009, %v1009
        %v1011 = vld [vmem:[%s12] sm:$0xf]
        %v1012 = vld [vmem:[%s12 + $0x4] sm:$0xf]
        %v1013 = vld [vmem:[%s12 + $0x8] sm:$0xf]
        %v1014 = vld [vmem:[%s12 + $0xc] sm:$0xf]
        %v1015 = vld [vmem:[%s13] sm:$0x1]
        %v1017 = vlaneseq
        %v1018 = vshrl.u32 %v1017, 7
        %v1019 = vsub.s32 0, %v1018
        %v1020 = vrot.slane %v1015, %v1019
        %v1026 = vunpack.c.l.b16 %v1011
        %v1027 = vunpack.c.l.b16 %v1012
        %v1028 = vunpack.c.l.b16 %v1013
        %v1029 = vunpack.c.l.b16 %v1014
        %v1030 = vpack.c.b16 %v1027, %v1026
        %v1031 = vpack.c.b16 %v1029, %v1028
        %v1035 = vsel %vm825, %v1010, 0
        %1037 = vmatprep.subr.bf16.mxu0 0
        %1038 = vmatpush1.bf16.msra.mxu0 %v1030
        %1039 = vmatprep.subr.bf16.mxu0 0
        %1040 = vmatpush1.bf16.msra.mxu0 %v1031
        %1041 = vmatprep.subr.bf16.mxu0 0
        %1042 = vmatpush1.bf16.msra.mxu0 0
        %1043 = vmatprep.subr.bf16.mxu0 0
        %1044 = vmatpush1.bf16.msra.mxu0 0
        %1045 = vmatprep.subr.bf16.mxu0 0
        %1046 = vmatpush1.bf16.msra.mxu0 0
        %1047 = vmatprep.subr.bf16.mxu0 0
        %1048 = vmatpush1.bf16.msra.mxu0 0
        %1049 = vmatprep.subr.bf16.mxu0 0
        %1050 = vmatpush1.bf16.msra.mxu0 0
        %1051 = vmatprep.subr.bf16.mxu0 0
        %1052 = vmatpush1.bf16.msra.mxu0 0
        %1053 = vmatprep.subr.bf16.mxu0 0
        %1054 = vmatpush1.bf16.msra.mxu0 0
        %1055 = vmatprep.subr.bf16.mxu0 0
        %1056 = vmatpush1.bf16.msra.mxu0 0
        %1057 = vmatprep.subr.bf16.mxu0 0
        %1058 = vmatpush1.bf16.msra.mxu0 0
        %1059 = vmatprep.subr.bf16.mxu0 0
        %1060 = vmatpush1.bf16.msra.mxu0 0
        %1061 = vmatprep.subr.bf16.mxu0 0
        %1062 = vmatpush1.bf16.msra.mxu0 0
        %1063 = vmatprep.subr.bf16.mxu0 0
        %1064 = vmatpush1.bf16.msra.mxu0 0
        %1065 = vmatprep.subr.bf16.mxu0 0
        %1066 = vmatpush1.bf16.msra.mxu0 0
        %1067 = vmatprep.subr.bf16.mxu0 0
        %1068 = vmatpush1.bf16.msra.mxu0 0
        %1069 = vmatprep.mubr.bf16.mxu0 0
        %1070 = vmatmul.mubr.bf16.gmra.mrb[0].mxu0 %v1035
        %v1071 = vpop.f32.mrb[0].mxu0
        %v1072 = vadd.f32 %v1020, %v1071
        %v1073 = vpop.f32.mrb[0].mxu0
        %v1074 = vpop.f32.mrb[0].mxu0
        %v1075 = vpop.f32.mrb[0].mxu0
        %1076 = vdwg.mxu0
        %v1077 = vsub.f32 0.0, %v1072
        %v1078 = vmul.f32 %v1077, 1.442695
        %v1079 = vpow.pop %v1078
        %v1080 = vadd.f32 %v1079, 1.0
        %v1081 = vrcp.pop %v1080
        %v1082 = vmul.f32 1.0, %v1081
        %v1083 = vld [vmem:[%s10] sm:$0xf]
        %v1084 = vld [vmem:[%s10 + $0x4] sm:$0xf]
        %v1085 = vld [vmem:[%s10 + $0x8] sm:$0xf]
        %v1086 = vld [vmem:[%s10 + $0xc] sm:$0xf]
        %v1087 = vld [vmem:[%s11] sm:$0x1]
        %v1089 = vlaneseq
        %v1090 = vshrl.u32 %v1089, 7
        %v1091 = vsub.s32 0, %v1090
        %v1092 = vrot.slane %v1087, %v1091
        %v1098 = vunpack.c.l.b16 %v1083
        %v1099 = vunpack.c.l.b16 %v1084
        %v1100 = vunpack.c.l.b16 %v1085
        %v1101 = vunpack.c.l.b16 %v1086
        %v1102 = vpack.c.b16 %v1099, %v1098
        %v1103 = vpack.c.b16 %v1101, %v1100
        %1106 = vmatprep.subr.bf16.mxu0 0
        %1107 = vmatpush1.bf16.msra.mxu0 %v1102
        %1108 = vmatprep.subr.bf16.mxu0 0
        %1109 = vmatpush1.bf16.msra.mxu0 %v1103
        %1110 = vmatprep.subr.bf16.mxu0 0
        %1111 = vmatpush1.bf16.msra.mxu0 0
        %1112 = vmatprep.subr.bf16.mxu0 0
        %1113 = vmatpush1.bf16.msra.mxu0 0
        %1114 = vmatprep.subr.bf16.mxu0 0
        %1115 = vmatpush1.bf16.msra.mxu0 0
        %1116 = vmatprep.subr.bf16.mxu0 0
        %1117 = vmatpush1.bf16.msra.mxu0 0
        %1118 = vmatprep.subr.bf16.mxu0 0
        %1119 = vmatpush1.bf16.msra.mxu0 0
        %1120 = vmatprep.subr.bf16.mxu0 0
        %1121 = vmatpush1.bf16.msra.mxu0 0
        %1122 = vmatprep.subr.bf16.mxu0 0
        %1123 = vmatpush1.bf16.msra.mxu0 0
        %1124 = vmatprep.subr.bf16.mxu0 0
        %1125 = vmatpush1.bf16.msra.mxu0 0
        %1126 = vmatprep.subr.bf16.mxu0 0
        %1127 = vmatpush1.bf16.msra.mxu0 0
        %1128 = vmatprep.subr.bf16.mxu0 0
        %1129 = vmatpush1.bf16.msra.mxu0 0
        %1130 = vmatprep.subr.bf16.mxu0 0
        %1131 = vmatpush1.bf16.msra.mxu0 0
        %1132 = vmatprep.subr.bf16.mxu0 0
        %1133 = vmatpush1.bf16.msra.mxu0 0
        %1134 = vmatprep.subr.bf16.mxu0 0
        %1135 = vmatpush1.bf16.msra.mxu0 0
        %1136 = vmatprep.subr.bf16.mxu0 0
        %1137 = vmatpush1.bf16.msra.mxu0 0
        %1138 = vmatprep.mubr.bf16.mxu0 0
        %1139 = vmatmul.mubr.bf16.gmra.mrb[0].mxu0 %v1035
        %v1140 = vpop.f32.mrb[0].mxu0
        %v1141 = vadd.f32 %v1092, %v1140
        %v1142 = vpop.f32.mrb[0].mxu0
        %v1143 = vpop.f32.mrb[0].mxu0
        %v1144 = vpop.f32.mrb[0].mxu0
        %1145 = vdwg.mxu0
        %v1146 = vmax.f32 %v1141, 0.0
        %v1147 = vmul.f32 %v1082, %v1146
        %v1148 = vsub.f32 1.0, %v1082
        %v1149 = vmul.f32 %v1148, %v1009
        %v1150 = vadd.f32 %v1147, %v1149
        %v1151 = vpack.c.bf16 %v1150, %v1150
        %vm1152 = vcmask 257024
        %1153 = vst.msk [vmem:[%s531] sm:$0xf] %vm1152, %v1151
        %s1154 = sand.u32 %s340, 1
        %s1155 = scalar_lea.sflag [#allocation4], %s1154
        %s1156 = sand.u32 %s340, 1
        %s1157 = smul.addr %s1156, 4
        %s1158 = scalar_lea.vmem [#allocation3], %s1157
        // Predicated region
        $region118: #{embedding_fwd.1} parent=112 // pred_check
          %p1159 = pneg %p350
        $region119: #{embedding_fwd.1} parent=112 // pred_check_branch
          %1161 = sbr.rel (%p1159) target = $region121
        $region120: #{embedding_fwd.1} parent=112 // pred_region
          %s1163 = ssub.s32 64, 64
          %1164 = vsyncadd %s1155, %s1163
          %s1165 = smul.addr %s28, 64
          %s1166 = scalar_lea.hbm %s14, %s1165
          %s1168 = sshll.u32 %s1158, 4
          %s1169 = int_to_ptr.vmem [resolvable:$true] %s1168
          %1171 = dma.vmem_to_hbm [thread:$0]  %s1169, 64, %s1166, %s1155
        $region121: #{embedding_fwd.1} parent=112 // pred_fallthru
          _
      $region113: #{embedding_fwd.1} parent=5 // pred_fallthru
        _
      %p1172 = scmp.le.s32.totalorder 2, %s23
      // Predicated region
      $region122: #{embedding_fwd.1} parent=5 // pred_check
        %p1173 = pneg %p1172
      $region123: #{embedding_fwd.1} parent=5 // pred_check_branch
        %1175 = sbr.rel (%p1173) target = $region125
      $region124: #{embedding_fwd.1} parent=5 // pred_region
        %s1176 = ssub.s32 %s23, 2
        // Predicated region
        $region126: #{embedding_fwd.1} parent=124 // pred_check
          %p1177 = pneg %p356
        $region127: #{embedding_fwd.1} parent=124 // pred_check_branch
          %1179 = sbr.rel (%p1177) target = $region129
        $region128: #{embedding_fwd.1} parent=124 // pred_region
          %s1180 = sand.u32 %s341, 1
          %s1181 = scalar_lea.sflag [#allocation4], %s1180
          %s1182 = sand.u32 %s341, 1
          %s1183 = smul.addr %s1182, 4
          %s1184 = scalar_lea.vmem [#allocation3], %s1183
          %1185 = dma.done %s1181, 64
        $region129: #{embedding_fwd.1} parent=124 // pred_fallthru
          _
      $region125: #{embedding_fwd.1} parent=5 // pred_fallthru
        _
    $region6: #{embedding_fwd.1} parent=1 // loop_footer
      %s27 = sadd.s32 1, %s23
    $region7: #{embedding_fwd.1} parent=1 // loop_footer_branch
      %22 = sbr.rel target = $region3
    $region8: #{embedding_fwd.1} parent=1 // loop_exit
      _
    %1186 = vsyncpa [#allocation4], 1
    %s1187 = scalar_lea.sflag [#allocation4], 1
    %1188 = vsyncpa %s1187, 1

</llo_original>
